<compile_context>
chip_gen: v7x
topology: tpu7x:2x2x1
jax: 0.10.0
libtpu: 0.0.40
codegen_flags: <defaults>
</compile_context>

<pallas_src>
import math
import functools

import jax
import jax.numpy as jnp
from jax import lax
from jax.experimental import pallas as pl
from jax.experimental.pallas import tpu as pltpu


def _masked_softmax(s, *, seq_valid: int, seq_len: int):
    """Row softmax over the last axis; masks padded key columns if any."""
    if seq_valid != seq_len:
        kidx = lax.broadcasted_iota(jnp.int32, s.shape, s.ndim - 1)
        s = jnp.where(kidx < seq_valid, s, -1e9)
    m = jnp.max(s, axis=-1, keepdims=True)
    p = jnp.exp(s - m)
    denom = jnp.sum(p, axis=-1, keepdims=True)
    # approx reciprocal: softmax rows sum to 1 only to ~1e-3; acceptable here.
    return p * pl.reciprocal(denom, approx=True)


def _mhatt_kernel(q_ref, k_ref, v_ref,
                  wq_ref, bq_ref,
                  wk_ref, bk_ref,
                  wv_ref, bv_ref,
                  wm_ref, bm_ref,
                  o_ref,
                  head_scratch,
                  *, n_batch: int, seq_len: int, seq_valid: int,
                  multi_head: int, head_size: int):
    """One grid step processes `n_batch` batch elements folded into a
    (n_batch*seq_len, E) row tile."""
    M = n_batch * seq_len

    # f32 activations -> bf16 right before the MXU (VPU cast hidden under MXU).
    xq = q_ref[...].astype(jnp.bfloat16)
    xk = k_ref[...].astype(jnp.bfloat16)
    xv = v_ref[...].astype(jnp.bfloat16)

    # Full-width projections, f32 MXU accumulation.  1/sqrt(Dh) is already
    # folded into wq/bq by the wrapper.
    qp = jnp.dot(xq, wq_ref[...], preferred_element_type=jnp.float32) + bq_ref[...]
    kp = jnp.dot(xk, wk_ref[...], preferred_element_type=jnp.float32) + bk_ref[...]
    vp = jnp.dot(xv, wv_ref[...], preferred_element_type=jnp.float32) + bv_ref[...]

    # TODO(synk): attention-map dropout is identity in eval mode (model.eval()).
    for h in range(multi_head):
        lo = h * head_size
        hi = lo + head_size
        # Lane slices of the f32 projections (128-aligned when Dh % 128 == 0).
        qh = qp[:, lo:hi].astype(jnp.bfloat16)   # (M, Dh)
        kh = kp[:, lo:hi].astype(jnp.bfloat16)
        vh = vp[:, lo:hi].astype(jnp.bfloat16)

        if n_batch == 1:
            s = lax.dot_general(qh, kh, (((1,), (1,)), ((), ())),
                                preferred_element_type=jnp.float32)     # (S, S)
            p = _masked_softmax(s, seq_valid=seq_valid, seq_len=seq_len)
            ho = jnp.dot(p.astype(jnp.bfloat16), vh,
                         preferred_element_type=jnp.float32)            # (S, Dh)
        else:
            qh3 = qh.reshape(n_batch, seq_len, head_size)
            kh3 = kh.reshape(n_batch, seq_len, head_size)
            vh3 = vh.reshape(n_batch, seq_len, head_size)
            # Batched QK^T / PV: attention is block-diagonal over the folded batch.
            s = lax.dot_general(qh3, kh3, (((2,), (2,)), ((0,), (0,))),
                                preferred_element_type=jnp.float32)     # (nb, S, S)
            p = _masked_softmax(s, seq_valid=seq_valid, seq_len=seq_len)
            ho = lax.dot_general(p.astype(jnp.bfloat16), vh3,
                                 (((2,), (1,)), ((0,), (0,))),
                                 preferred_element_type=jnp.float32)    # (nb, S, Dh)
            ho = ho.reshape(M, head_size)

        # Head output goes to VMEM scratch (bf16) at its lane slice; no f32
        # accumulator lives across the head loop.
        head_scratch[:, lo:hi] = ho.astype(jnp.bfloat16)

    # Single full-width merge matmul over all heads (K = E).
    merged = jnp.dot(head_scratch[...], wm_ref[...],
                     preferred_element_type=jnp.float32)
    o_ref[...] = (merged + bm_ref[...]).astype(o_ref.dtype)


def _pick_batch_block(B: int, S: int, target_rows: int = 512) -> int:
    """Largest divisor nb of B with nb*S <= ~target_rows rows, keeping the grid
    >= 2 whenever B >= 2 (v7x has 2 TensorCores).  S is already padded to a
    multiple of 8 by the wrapper, so nb*S is always sublane-aligned."""
    cap = B if B == 1 else max(1, B // 2)
    best = 1
    for nb in range(1, cap + 1):
        if B % nb == 0 and nb * S <= max(target_rows, S):
            best = nb
    return best


def mhatt_forward(q, k, v, params, *, multi_head: int):
    """q, k, v: (B, S, E) float32. params: (in,out) weights + (1,E) biases."""
    B, S, E = q.shape
    assert E % multi_head == 0, "embedding_size must be divisible by multi_head"
    head_size = E // multi_head
    scale = 1.0 / math.sqrt(head_size)

    # Pad sequence to a multiple of 8 (sublane alignment); padded key columns
    # are masked inside the kernel and padded rows are dropped at the end.
    S_pad = ((S + 7) // 8) * 8
    if S_pad != S:
        pad = ((0, 0), (0, S_pad - S), (0, 0))
        q = jnp.pad(q, pad)
        k = jnp.pad(k, pad)
        v = jnp.pad(v, pad)

    nb = _pick_batch_block(B, S_pad)
    tile_m = nb * S_pad
    grid = (B // nb,)

    # Fold batch*seq into the matmul M dimension; activations stay f32 (cast to
    # bf16 inside the kernel to avoid a separate HBM cast pass).
    q2 = q.reshape(B * S_pad, E)
    k2 = k.reshape(B * S_pad, E)
    v2 = v.reshape(B * S_pad, E)

    # bf16 MXU weight operands; 1/sqrt(Dh) folded into the Q projection.
    wq = (params["wq"] * scale).astype(jnp.bfloat16)
    bq = params["bq"] * scale
    wk = params["wk"].astype(jnp.bfloat16)
    wv = params["wv"].astype(jnp.bfloat16)
    wm = params["wm"].astype(jnp.bfloat16)

    kernel = functools.partial(_mhatt_kernel,
                               n_batch=nb, seq_len=S_pad, seq_valid=S,
                               multi_head=multi_head, head_size=head_size)

    act_spec = pl.BlockSpec((tile_m, E), lambda i: (i, 0))
    # Weight/bias blocks are grid-invariant; at E=256 the default double-buffer
    # footprint is negligible (raise to pl.Buffered(1) only for E >= 1024 on v7x).
    w_spec = pl.BlockSpec((E, E), lambda i: (0, 0))
    b_spec = pl.BlockSpec((1, E), lambda i: (0, 0))

    cost = pl.CostEstimate(
        flops=8 * B * S_pad * E * E + 4 * B * S_pad * S_pad * E,
        transcendentals=B * multi_head * S_pad * S_pad,
        bytes_accessed=(3 * B * S_pad * E * 4      # f32 activation reads
                        + B * S_pad * E * 4        # f32 output write
                        + 4 * E * E * 2            # bf16 weights
                        + 4 * E * 4),              # f32 biases
    )

    out2 = pl.pallas_call(
        kernel,
        out_shape=jax.ShapeDtypeStruct((B * S_pad, E), jnp.float32),
        grid_spec=pltpu.PrefetchScalarGridSpec(
            num_scalar_prefetch=0,
            grid=grid,
            in_specs=[act_spec, act_spec, act_spec,
                      w_spec, b_spec,
                      w_spec, b_spec,
                      w_spec, b_spec,
                      w_spec, b_spec],
            out_specs=act_spec,
            scratch_shapes=[pltpu.VMEM((tile_m, E), jnp.bfloat16)],
        ),
        compiler_params=pltpu.CompilerParams(
            dimension_semantics=("parallel",)),
        cost_estimate=cost,
    )(q2, k2, v2,
      wq, bq,
      wk, params["bk"],
      wv, params["bv"],
      wm, params["bm"])

    out = out2.reshape(B, S_pad, E)
    if S_pad != S:
        out = out[:, :S, :]
    return out


def mhatt_reference(q, k, v, params, *, multi_head: int):
    """Pure-JAX f32 reference mirroring the PyTorch module (eval mode)."""
    B, S, E = q.shape
    Dh = E // multi_head

    def lin(x, w, b):
        return x @ w + b  # w is (in, out) = W_pt.T, b is (1, E)

    qp = lin(q, params["wq"], params["bq"]).reshape(B, S, multi_head, Dh).transpose(0, 2, 1, 3)
    kp = lin(k, params["wk"], params["bk"]).reshape(B, S, multi_head, Dh).transpose(0, 2, 1, 3)
    vp = lin(v, params["wv"], params["bv"]).reshape(B, S, multi_head, Dh).transpose(0, 2, 1, 3)

    scores = jnp.einsum("bhqd,bhkd->bhqk", qp, kp) / math.sqrt(Dh)
    att = jax.nn.softmax(scores, axis=-1)
    out = jnp.einsum("bhqk,bhkd->bhqd", att, vp)
    out = out.transpose(0, 2, 1, 3).reshape(B, S, E)
    return lin(out, params["wm"], params["bm"])


def init_params(key, embedding_size):
    """Deterministic synthetic weights; stored as (in, out) = PyTorch W.T."""
    E = embedding_size
    keys = jax.random.split(key, 8)
    bound = 1.0 / math.sqrt(E)

    def w(kk):
        return jax.random.uniform(kk, (E, E), jnp.float32, -bound, bound)

    def b(kk):
        return jax.random.uniform(kk, (1, E), jnp.float32, -bound, bound)

    return dict(
        wv=w(keys[0]), bv=b(keys[1]),
        wk=w(keys[2]), bk=b(keys[3]),
        wq=w(keys[4]), bq=b(keys[5]),
        wm=w(keys[6]), bm=b(keys[7]),
    )


if __name__ == "__main__":
    # Small shapes: batch=4, seq=8, embedding_size=256 (module default,
    # lane-aligned), multi_head=2 (head_size=128) — exercises both the
    # multi-head lane-slice path and the batched (nb=2) attention path with a
    # grid of 2 parallel steps.
    B, S, E = 4, 8, 256
    MULTI_HEAD = 2

    key = jax.random.PRNGKey(0)
    kq, kk, kv, kp = jax.random.split(key, 4)
    q = jax.random.normal(kq, (B, S, E), jnp.float32)
    k = jax.random.normal(kk, (B, S, E), jnp.float32)
    v = jax.random.normal(kv, (B, S, E), jnp.float32)
    params = init_params(kp, E)

    out = mhatt_forward(q, k, v, params, multi_head=MULTI_HEAD)
    out = jax.block_until_ready(out)

    ref = mhatt_reference(q, k, v, params, multi_head=MULTI_HEAD)
    assert out.shape == (B, S, E)
    max_err = float(jnp.max(jnp.abs(out - ref)))
    # bf16 matmul operands + approx reciprocal -> loosened tolerance vs the f32 reference.
    assert jnp.allclose(out, ref, atol=3e-2, rtol=3e-2), (
        f"Pallas output != reference (max abs err {max_err})")

    print("KERNEL_OK")
</pallas_src>

<mosaic_0001>
module attributes {stable_mosaic.version = 11 : i64} {
  func.func @_mhatt_kernel(%arg0: i32, %arg1: memref<16x256xf32, #tpu.memory_space<vmem>>, %arg2: memref<16x256xf32, #tpu.memory_space<vmem>>, %arg3: memref<16x256xf32, #tpu.memory_space<vmem>>, %arg4: memref<256x256xbf16, #tpu.memory_space<vmem>>, %arg5: memref<1x256xf32, #tpu.memory_space<vmem>>, %arg6: memref<256x256xbf16, #tpu.memory_space<vmem>>, %arg7: memref<1x256xf32, #tpu.memory_space<vmem>>, %arg8: memref<256x256xbf16, #tpu.memory_space<vmem>>, %arg9: memref<1x256xf32, #tpu.memory_space<vmem>>, %arg10: memref<256x256xbf16, #tpu.memory_space<vmem>>, %arg11: memref<1x256xf32, #tpu.memory_space<vmem>>, %arg12: memref<16x256xf32, #tpu.memory_space<vmem>>, %arg13: memref<16x256xbf16, #tpu.memory_space<vmem>>) attributes {dimension_semantics = [#tpu.dimension_semantics<parallel>], iteration_bounds = array<i64: 2>, scalar_prefetch = 0 : i64, scratch_operands = 1 : i64, tpu.core_type = #tpu.core_type<tc>, window_params = [{transform_indices = @transform_0, window_bounds = array<i64: 16, 256>}, {transform_indices = @transform_1, window_bounds = array<i64: 16, 256>}, {transform_indices = @transform_2, window_bounds = array<i64: 16, 256>}, {pipeline_mode = #tpu.pipeline_mode<synchronous>, transform_indices = @transform_3, window_bounds = array<i64: 256, 256>}, {pipeline_mode = #tpu.pipeline_mode<synchronous>, transform_indices = @transform_4, window_bounds = array<i64: 1, 256>}, {pipeline_mode = #tpu.pipeline_mode<synchronous>, transform_indices = @transform_5, window_bounds = array<i64: 256, 256>}, {pipeline_mode = #tpu.pipeline_mode<synchronous>, transform_indices = @transform_6, window_bounds = array<i64: 1, 256>}, {pipeline_mode = #tpu.pipeline_mode<synchronous>, transform_indices = @transform_7, window_bounds = array<i64: 256, 256>}, {pipeline_mode = #tpu.pipeline_mode<synchronous>, transform_indices = @transform_8, window_bounds = array<i64: 1, 256>}, {pipeline_mode = #tpu.pipeline_mode<synchronous>, transform_indices = @transform_9, window_bounds = array<i64: 256, 256>}, {pipeline_mode = #tpu.pipeline_mode<synchronous>, transform_indices = @transform_10, window_bounds = array<i64: 1, 256>}, {transform_indices = @transform_11, window_bounds = array<i64: 16, 256>}]} {
    %c0 = arith.constant 0 : index
    %c0_0 = arith.constant 0 : index
    %0 = vector.load %arg1[%c0, %c0_0] : memref<16x256xf32, #tpu.memory_space<vmem>>, vector<16x256xf32>
    %1 = arith.truncf %0 : vector<16x256xf32> to vector<16x256xbf16>
    %c0_1 = arith.constant 0 : index
    %c0_2 = arith.constant 0 : index
    %2 = vector.load %arg2[%c0_1, %c0_2] : memref<16x256xf32, #tpu.memory_space<vmem>>, vector<16x256xf32>
    %3 = arith.truncf %2 : vector<16x256xf32> to vector<16x256xbf16>
    %c0_3 = arith.constant 0 : index
    %c0_4 = arith.constant 0 : index
    %4 = vector.load %arg3[%c0_3, %c0_4] : memref<16x256xf32, #tpu.memory_space<vmem>>, vector<16x256xf32>
    %5 = arith.truncf %4 : vector<16x256xf32> to vector<16x256xbf16>
    %c0_5 = arith.constant 0 : index
    %c0_6 = arith.constant 0 : index
    %6 = vector.load %arg4[%c0_5, %c0_6] : memref<256x256xbf16, #tpu.memory_space<vmem>>, vector<256x256xbf16>
    %cst = arith.constant dense<0.000000e+00> : vector<16x256xf32>
    %7 = tpu.matmul %1, %6, %cst {dimension_numbers = #tpu.dot_dimension_numbers<[1], [0], [0], [1], [0, 0, 1, 1], [], []>} : vector<16x256xbf16>, vector<256x256xbf16>, vector<16x256xf32> -> vector<16x256xf32>
    %c0_7 = arith.constant 0 : index
    %c0_8 = arith.constant 0 : index
    %8 = vector.load %arg5[%c0_7, %c0_8] : memref<1x256xf32, #tpu.memory_space<vmem>>, vector<1x256xf32>
    %9 = vector.broadcast %8 : vector<1x256xf32> to vector<16x256xf32>
    %10 = arith.addf %7, %9 : vector<16x256xf32>
    %c0_9 = arith.constant 0 : index
    %c0_10 = arith.constant 0 : index
    %11 = vector.load %arg6[%c0_9, %c0_10] : memref<256x256xbf16, #tpu.memory_space<vmem>>, vector<256x256xbf16>
    %cst_11 = arith.constant dense<0.000000e+00> : vector<16x256xf32>
    %12 = tpu.matmul %3, %11, %cst_11 {dimension_numbers = #tpu.dot_dimension_numbers<[1], [0], [0], [1], [0, 0, 1, 1], [], []>} : vector<16x256xbf16>, vector<256x256xbf16>, vector<16x256xf32> -> vector<16x256xf32>
    %c0_12 = arith.constant 0 : index
    %c0_13 = arith.constant 0 : index
    %13 = vector.load %arg7[%c0_12, %c0_13] : memref<1x256xf32, #tpu.memory_space<vmem>>, vector<1x256xf32>
    %14 = vector.broadcast %13 : vector<1x256xf32> to vector<16x256xf32>
    %15 = arith.addf %12, %14 : vector<16x256xf32>
    %c0_14 = arith.constant 0 : index
    %c0_15 = arith.constant 0 : index
    %16 = vector.load %arg8[%c0_14, %c0_15] : memref<256x256xbf16, #tpu.memory_space<vmem>>, vector<256x256xbf16>
    %cst_16 = arith.constant dense<0.000000e+00> : vector<16x256xf32>
    %17 = tpu.matmul %5, %16, %cst_16 {dimension_numbers = #tpu.dot_dimension_numbers<[1], [0], [0], [1], [0, 0, 1, 1], [], []>} : vector<16x256xbf16>, vector<256x256xbf16>, vector<16x256xf32> -> vector<16x256xf32>
    %c0_17 = arith.constant 0 : index
    %c0_18 = arith.constant 0 : index
    %18 = vector.load %arg9[%c0_17, %c0_18] : memref<1x256xf32, #tpu.memory_space<vmem>>, vector<1x256xf32>
    %19 = vector.broadcast %18 : vector<1x256xf32> to vector<16x256xf32>
    %20 = arith.addf %17, %19 : vector<16x256xf32>
    %21 = vector.extract_strided_slice %10 {offsets = [0, 0], sizes = [16, 128], strides = [1, 1]} : vector<16x256xf32> to vector<16x128xf32>
    %22 = arith.truncf %21 : vector<16x128xf32> to vector<16x128xbf16>
    %23 = vector.extract_strided_slice %15 {offsets = [0, 0], sizes = [16, 128], strides = [1, 1]} : vector<16x256xf32> to vector<16x128xf32>
    %24 = arith.truncf %23 : vector<16x128xf32> to vector<16x128xbf16>
    %25 = vector.extract_strided_slice %20 {offsets = [0, 0], sizes = [16, 128], strides = [1, 1]} : vector<16x256xf32> to vector<16x128xf32>
    %26 = arith.truncf %25 : vector<16x128xf32> to vector<16x128xbf16>
    %27 = vector.shape_cast %22 : vector<16x128xbf16> to vector<2x8x128xbf16>
    %28 = vector.shape_cast %24 : vector<16x128xbf16> to vector<2x8x128xbf16>
    %29 = vector.shape_cast %26 : vector<16x128xbf16> to vector<2x8x128xbf16>
    %cst_19 = arith.constant dense<0.000000e+00> : vector<2x8x8xf32>
    %30 = tpu.matmul %27, %28, %cst_19 {dimension_numbers = #tpu.dot_dimension_numbers<[2], [2], [1], [1], [0, 0, 0, 1, 1, 1], [0], [0]>} : vector<2x8x128xbf16>, vector<2x8x128xbf16>, vector<2x8x8xf32> -> vector<2x8x8xf32>
    %cst_20 = arith.constant dense<0xFF800000> : vector<2x8xf32>
    %31 = vector.multi_reduction <maximumf>, %30, %cst_20 [2] : vector<2x8x8xf32> to vector<2x8xf32>
    %32 = vector.shape_cast %31 : vector<2x8xf32> to vector<2x8x1xf32>
    %33 = vector.broadcast %32 : vector<2x8x1xf32> to vector<2x8x8xf32>
    %34 = arith.subf %30, %33 : vector<2x8x8xf32>
    %35 = math.exp %34 : vector<2x8x8xf32>
    %cst_21 = arith.constant dense<0.000000e+00> : vector<2x8xf32>
    %36 = vector.multi_reduction <add>, %35, %cst_21 [2] : vector<2x8x8xf32> to vector<2x8xf32>
    %37 = vector.shape_cast %36 : vector<2x8xf32> to vector<2x8x1xf32>
    %38 = tpu.reciprocal %37 {approx = true} : vector<2x8x1xf32> -> vector<2x8x1xf32>
    %39 = vector.broadcast %38 : vector<2x8x1xf32> to vector<2x8x8xf32>
    %40 = arith.mulf %35, %39 : vector<2x8x8xf32>
    %41 = arith.truncf %40 : vector<2x8x8xf32> to vector<2x8x8xbf16>
    %cst_22 = arith.constant dense<0.000000e+00> : vector<2x8x128xf32>
    %42 = tpu.matmul %41, %29, %cst_22 {dimension_numbers = #tpu.dot_dimension_numbers<[2], [1], [1], [2], [0, 0, 0, 1, 1, 2], [0], [0]>} : vector<2x8x8xbf16>, vector<2x8x128xbf16>, vector<2x8x128xf32> -> vector<2x8x128xf32>
    %43 = vector.shape_cast %42 : vector<2x8x128xf32> to vector<16x128xf32>
    %44 = arith.truncf %43 : vector<16x128xf32> to vector<16x128xbf16>
    %c0_23 = arith.constant 0 : index
    %c0_24 = arith.constant 0 : index
    %45 = vector.load %arg13[%c0_23, %c0_24] : memref<16x256xbf16, #tpu.memory_space<vmem>>, vector<16x128xbf16>
    tpu.vector_store %arg13[%c0_23, %c0_24], %44 {strides = array<i32>} : memref<16x256xbf16, #tpu.memory_space<vmem>>, vector<16x128xbf16>,
    %46 = vector.extract_strided_slice %10 {offsets = [0, 128], sizes = [16, 128], strides = [1, 1]} : vector<16x256xf32> to vector<16x128xf32>
    %47 = arith.truncf %46 : vector<16x128xf32> to vector<16x128xbf16>
    %48 = vector.extract_strided_slice %15 {offsets = [0, 128], sizes = [16, 128], strides = [1, 1]} : vector<16x256xf32> to vector<16x128xf32>
    %49 = arith.truncf %48 : vector<16x128xf32> to vector<16x128xbf16>
    %50 = vector.extract_strided_slice %20 {offsets = [0, 128], sizes = [16, 128], strides = [1, 1]} : vector<16x256xf32> to vector<16x128xf32>
    %51 = arith.truncf %50 : vector<16x128xf32> to vector<16x128xbf16>
    %52 = vector.shape_cast %47 : vector<16x128xbf16> to vector<2x8x128xbf16>
    %53 = vector.shape_cast %49 : vector<16x128xbf16> to vector<2x8x128xbf16>
    %54 = vector.shape_cast %51 : vector<16x128xbf16> to vector<2x8x128xbf16>
    %cst_25 = arith.constant dense<0.000000e+00> : vector<2x8x8xf32>
    %55 = tpu.matmul %52, %53, %cst_25 {dimension_numbers = #tpu.dot_dimension_numbers<[2], [2], [1], [1], [0, 0, 0, 1, 1, 1], [0], [0]>} : vector<2x8x128xbf16>, vector<2x8x128xbf16>, vector<2x8x8xf32> -> vector<2x8x8xf32>
    %cst_26 = arith.constant dense<0xFF800000> : vector<2x8xf32>
    %56 = vector.multi_reduction <maximumf>, %55, %cst_26 [2] : vector<2x8x8xf32> to vector<2x8xf32>
    %57 = vector.shape_cast %56 : vector<2x8xf32> to vector<2x8x1xf32>
    %58 = vector.broadcast %57 : vector<2x8x1xf32> to vector<2x8x8xf32>
    %59 = arith.subf %55, %58 : vector<2x8x8xf32>
    %60 = math.exp %59 : vector<2x8x8xf32>
    %cst_27 = arith.constant dense<0.000000e+00> : vector<2x8xf32>
    %61 = vector.multi_reduction <add>, %60, %cst_27 [2] : vector<2x8x8xf32> to vector<2x8xf32>
    %62 = vector.shape_cast %61 : vector<2x8xf32> to vector<2x8x1xf32>
    %63 = tpu.reciprocal %62 {approx = true} : vector<2x8x1xf32> -> vector<2x8x1xf32>
    %64 = vector.broadcast %63 : vector<2x8x1xf32> to vector<2x8x8xf32>
    %65 = arith.mulf %60, %64 : vector<2x8x8xf32>
    %66 = arith.truncf %65 : vector<2x8x8xf32> to vector<2x8x8xbf16>
    %cst_28 = arith.constant dense<0.000000e+00> : vector<2x8x128xf32>
    %67 = tpu.matmul %66, %54, %cst_28 {dimension_numbers = #tpu.dot_dimension_numbers<[2], [1], [1], [2], [0, 0, 0, 1, 1, 2], [0], [0]>} : vector<2x8x8xbf16>, vector<2x8x128xbf16>, vector<2x8x128xf32> -> vector<2x8x128xf32>
    %68 = vector.shape_cast %67 : vector<2x8x128xf32> to vector<16x128xf32>
    %69 = arith.truncf %68 : vector<16x128xf32> to vector<16x128xbf16>
    %c0_29 = arith.constant 0 : index
    %c128 = arith.constant 128 : index
    %70 = vector.load %arg13[%c0_29, %c128] : memref<16x256xbf16, #tpu.memory_space<vmem>>, vector<16x128xbf16>
    tpu.vector_store %arg13[%c0_29, %c128], %69 {strides = array<i32>} : memref<16x256xbf16, #tpu.memory_space<vmem>>, vector<16x128xbf16>,
    %c0_30 = arith.constant 0 : index
    %c0_31 = arith.constant 0 : index
    %71 = vector.load %arg13[%c0_30, %c0_31] : memref<16x256xbf16, #tpu.memory_space<vmem>>, vector<16x256xbf16>
    %c0_32 = arith.constant 0 : index
    %c0_33 = arith.constant 0 : index
    %72 = vector.load %arg10[%c0_32, %c0_33] : memref<256x256xbf16, #tpu.memory_space<vmem>>, vector<256x256xbf16>
    %cst_34 = arith.constant dense<0.000000e+00> : vector<16x256xf32>
    %73 = tpu.matmul %71, %72, %cst_34 {dimension_numbers = #tpu.dot_dimension_numbers<[1], [0], [0], [1], [0, 0, 1, 1], [], []>} : vector<16x256xbf16>, vector<256x256xbf16>, vector<16x256xf32> -> vector<16x256xf32>
    %c0_35 = arith.constant 0 : index
    %c0_36 = arith.constant 0 : index
    %74 = vector.load %arg11[%c0_35, %c0_36] : memref<1x256xf32, #tpu.memory_space<vmem>>, vector<1x256xf32>
    %75 = vector.broadcast %74 : vector<1x256xf32> to vector<16x256xf32>
    %76 = arith.addf %73, %75 : vector<16x256xf32>
    %c0_37 = arith.constant 0 : index
    %c0_38 = arith.constant 0 : index
    %77 = vector.load %arg12[%c0_37, %c0_38] : memref<16x256xf32, #tpu.memory_space<vmem>>, vector<16x256xf32>
    tpu.vector_store %arg12[%c0_37, %c0_38], %76 {strides = array<i32>} : memref<16x256xf32, #tpu.memory_space<vmem>>, vector<16x256xf32>,
    return
  }
  func.func @transform_0(%arg0: i32) -> (i32, i32) {
    %c0_i32 = arith.constant 0 : i32
    %c0_i32_0 = arith.constant 0 : i32
    return %arg0, %c0_i32 : i32, i32
  }
  func.func @transform_1(%arg0: i32) -> (i32, i32) {
    %c0_i32 = arith.constant 0 : i32
    %c0_i32_0 = arith.constant 0 : i32
    return %arg0, %c0_i32 : i32, i32
  }
  func.func @transform_2(%arg0: i32) -> (i32, i32) {
    %c0_i32 = arith.constant 0 : i32
    %c0_i32_0 = arith.constant 0 : i32
    return %arg0, %c0_i32 : i32, i32
  }
  func.func @transform_3(%arg0: i32) -> (i32, i32) {
    %c0_i32 = arith.constant 0 : i32
    %c0_i32_0 = arith.constant 0 : i32
    %c0_i32_1 = arith.constant 0 : i32
    return %c0_i32, %c0_i32_0 : i32, i32
  }
  func.func @transform_4(%arg0: i32) -> (i32, i32) {
    %c0_i32 = arith.constant 0 : i32
    %c0_i32_0 = arith.constant 0 : i32
    %c0_i32_1 = arith.constant 0 : i32
    return %c0_i32, %c0_i32_0 : i32, i32
  }
  func.func @transform_5(%arg0: i32) -> (i32, i32) {
    %c0_i32 = arith.constant 0 : i32
    %c0_i32_0 = arith.constant 0 : i32
    %c0_i32_1 = arith.constant 0 : i32
    return %c0_i32, %c0_i32_0 : i32, i32
  }
  func.func @transform_6(%arg0: i32) -> (i32, i32) {
    %c0_i32 = arith.constant 0 : i32
    %c0_i32_0 = arith.constant 0 : i32
    %c0_i32_1 = arith.constant 0 : i32
    return %c0_i32, %c0_i32_0 : i32, i32
  }
  func.func @transform_7(%arg0: i32) -> (i32, i32) {
    %c0_i32 = arith.constant 0 : i32
    %c0_i32_0 = arith.constant 0 : i32
    %c0_i32_1 = arith.constant 0 : i32
    return %c0_i32, %c0_i32_0 : i32, i32
  }
  func.func @transform_8(%arg0: i32) -> (i32, i32) {
    %c0_i32 = arith.constant 0 : i32
    %c0_i32_0 = arith.constant 0 : i32
    %c0_i32_1 = arith.constant 0 : i32
    return %c0_i32, %c0_i32_0 : i32, i32
  }
  func.func @transform_9(%arg0: i32) -> (i32, i32) {
    %c0_i32 = arith.constant 0 : i32
    %c0_i32_0 = arith.constant 0 : i32
    %c0_i32_1 = arith.constant 0 : i32
    return %c0_i32, %c0_i32_0 : i32, i32
  }
  func.func @transform_10(%arg0: i32) -> (i32, i32) {
    %c0_i32 = arith.constant 0 : i32
    %c0_i32_0 = arith.constant 0 : i32
    %c0_i32_1 = arith.constant 0 : i32
    return %c0_i32, %c0_i32_0 : i32, i32
  }
  func.func @transform_11(%arg0: i32) -> (i32, i32) {
    %c0_i32 = arith.constant 0 : i32
    %c0_i32_0 = arith.constant 0 : i32
    return %arg0, %c0_i32 : i32, i32
  }
}

</mosaic_0001>

<llo_original>
// kernel: tpu_custom_call.1
$region0: #{tpu_custom_call.1}
  #allocation0 [shape = 'u32[]', space=smem, size = 0x4, offset = 0x4, fixed_abs, tag = 'smem constant byte address 0x4 - core index']
  #allocation1 [shape = 'u32[144,128]{1,0:T(1,128)}', space=vmem, size = 0x12000, scoped, tag = 'internal scratch']
  #allocation2 [shape = 'bf16[16,256]{1,0:T(16,128)(2,1)}', space=vmem, size = 0x2000, scoped, tag = 'scratch operand']
  %s0 = inlined_call_operand.hbm [shape: f32[32,256], index: 0, kind: input, shape index: {}]
  %s1 = inlined_call_operand.hbm [shape: f32[32,256], index: 1, kind: input, shape index: {}]
  %s2 = inlined_call_operand.hbm [shape: f32[32,256], index: 2, kind: input, shape index: {}]
  %s3 = inlined_call_operand.hbm [shape: bf16[256,256], index: 3, kind: input, shape index: {}]
  %s4 = inlined_call_operand.vmem [shape: f32[1,256], index: 4, kind: input, shape index: {}]
  %s5 = inlined_call_operand.hbm [shape: bf16[256,256], index: 5, kind: input, shape index: {}]
  %s6 = inlined_call_operand.vmem [shape: f32[1,256], index: 6, kind: input, shape index: {}]
  %s7 = inlined_call_operand.hbm [shape: bf16[256,256], index: 7, kind: input, shape index: {}]
  %s8 = inlined_call_operand.vmem [shape: f32[1,256], index: 8, kind: input, shape index: {}]
  %s9 = inlined_call_operand.hbm [shape: bf16[256,256], index: 9, kind: input, shape index: {}]
  %s10 = inlined_call_operand.vmem [shape: f32[1,256], index: 10, kind: input, shape index: {}]
  %s11 = inlined_call_operand.hbm [shape: f32[32,256], index: 11, kind: output, shape index: {}]
  %s12 = sld [smem:[#allocation0]]
  $region105: #{tpu_custom_call.1} parent=0
    _
  %s14 = ssub.s32 1, %s12
  %s15 = scalar_select 0, %s14, %s12
  $region1: #{tpu_custom_call.1} parent=0
    #allocation3 [shape = 'u8[32768]{0}', space=vmem, size = 0x8000, scoped, tag = 'input window, operand 0']
    #allocation4 [shape = 's32[2]{0}', space=sflag, size = 0x8, scoped, tag = 'scoped memory for tpu_custom_call.1']
    #allocation5 [shape = 's32[2]{0}', space=sflag, size = 0x8, scoped, tag = 'scoped memory for tpu_custom_call.1']
    #allocation6 [shape = 'u8[32768]{0}', space=vmem, size = 0x8000, scoped, tag = 'input window, operand 1']
    #allocation7 [shape = 's32[2]{0}', space=sflag, size = 0x8, scoped, tag = 'scoped memory for tpu_custom_call.1']
    #allocation8 [shape = 'u8[32768]{0}', space=vmem, size = 0x8000, scoped, tag = 'input window, operand 2']
    #allocation9 [shape = 'u8[131072]{0}', space=vmem, size = 0x20000, scoped, tag = 'input window, operand 3, single buffered']
    #allocation10 [shape = 's32[1]{0}', space=sflag, size = 0x4, scoped, tag = 'scoped memory for tpu_custom_call.1']
    #allocation11 [shape = 'u8[131072]{0}', space=vmem, size = 0x20000, scoped, tag = 'input window, operand 5, single buffered']
    #allocation12 [shape = 'u8[131072]{0}', space=vmem, size = 0x20000, scoped, tag = 'input window, operand 7, single buffered']
    #allocation13 [shape = 's32[1]{0}', space=sflag, size = 0x4, scoped, tag = 'scoped memory for tpu_custom_call.1']
    #allocation14 [shape = 'u8[131072]{0}', space=vmem, size = 0x20000, scoped, tag = 'input window, operand 9, single buffered']
    #allocation15 [shape = 'u8[32768]{0}', space=vmem, size = 0x8000, scoped, tag = 'output window, operand 0']
    %16 = vsyncpa [#allocation4], 0
    %s17 = scalar_lea.sflag [#allocation4], 1
    %18 = vsyncpa %s17, 0
    %19 = vsyncpa [#allocation7], 0
    %s20 = scalar_lea.sflag [#allocation7], 1
    %21 = vsyncpa %s20, 0
    %22 = vsyncpa [#allocation10], 0
    %23 = vsyncpa [#allocation13], 0
    %24 = vsyncpa [#allocation5], 0
    %s25 = scalar_lea.sflag [#allocation5], 1
    %26 = vsyncpa %s25, 0
    loop: start=0, step=1, limit=4
    $region2: #{tpu_custom_call.1} parent=1 // loop_pre_header
      _
    $region3: #{tpu_custom_call.1} parent=1 // loop_header
      %s28 = sphi 0, %s32
      %p29 = scmp.ge.s32.totalorder %s28, 4
      %s38 = sphi 0, %s40
      %s41 = sphi 0, %s38
      %s42 = sphi 0, %s41
      %s58 = sphi 0, %s42
      %s64 = sphi 0, %s66
      %s67 = sphi 0, %s64
      %s68 = sphi 0, %s67
      %s84 = sphi 0, %s68
      %s90 = sphi 0, %s92
      %s93 = sphi 0, %s90
      %s94 = sphi 0, %s93
      %s110 = sphi 0, %s94
      %s114 = sphi 0, %s114
      %s116 = sphi 0, %s114
      %s117 = sphi 0, %s116
      %s131 = sphi 0, %s117
      %s135 = sphi 0, %s135
      %s137 = sphi 0, %s135
      %s138 = sphi 0, %s137
      %s152 = sphi 0, %s138
      %s156 = sphi 0, %s156
      %s158 = sphi 0, %s156
      %s159 = sphi 0, %s158
      %s173 = sphi 0, %s159
      %s177 = sphi 0, %s177
      %s179 = sphi 0, %s177
      %s180 = sphi 0, %s179
      %s194 = sphi 0, %s180
      %s198 = sphi 0, %s198
      %s200 = sphi 0, %s198
      %s201 = sphi 0, %s200
      %s215 = sphi 0, %s201
      %s219 = sphi 0, %s219
      %s221 = sphi 0, %s219
      %s222 = sphi 0, %s221
      %s236 = sphi 0, %s222
      %s240 = sphi 0, %s240
      %s242 = sphi 0, %s240
      %s243 = sphi 0, %s242
      %s257 = sphi 0, %s243
      %s261 = sphi 0, %s261
      %s263 = sphi 0, %s261
      %s264 = sphi 0, %s263
      %s278 = sphi 0, %s264
      %s284 = sphi 0, %s286
      %s287 = sphi 0, %s284
      %s288 = sphi 0, %s287
      %s304 = sphi 0, %s288
    $region4: #{tpu_custom_call.1} parent=1 // loop_header_branch
      %31 = sbr.rel (%p29) target = $region8
    $region5: #{tpu_custom_call.1} parent=1 // loop_body
      %s33 = ssub.s32 %s28, 1
      %s34 = ssub.s32 %s28, 2
      %s35 = sadd.s32 %s28, 1
      %s36 = ssub.s32 %s28, %s35
      %p37 = scmp.eq.s32.totalorder %s36, 0
      %s39 = sadd.s32 %s38, 1
      %s40 = scalar_select %p37, %s38, %s39
      %p43 = pneg %p37
      %p44 = scmp.eq.s32.totalorder %s28, 1
      %p45 = por %p43, %p44
      %p46 = scmp.ne.s32.totalorder %s38, %s41
      %p47 = scmp.eq.s32.totalorder %s28, 0
      %p48 = por %p46, %p47
      %p49 = scmp.ne.s32.totalorder %s38, %s41
      %p50 = scmp.eq.s32.totalorder %s33, 1
      %p51 = por %p49, %p50
      %p52 = scmp.ne.s32.totalorder %s41, %s42
      %p53 = scmp.eq.s32.totalorder %s33, 0
      %p54 = por %p52, %p53
      %p55 = scmp.ne.s32.totalorder %s41, %s42
      %p56 = scmp.eq.s32.totalorder %s34, 1
      %p57 = por %p55, %p56
      %p59 = scmp.ne.s32.totalorder %s42, %s58
      %p60 = scmp.eq.s32.totalorder %s34, 0
      %p61 = por %p59, %p60
      %s62 = ssub.s32 %s28, %s35
      %p63 = scmp.eq.s32.totalorder %s62, 0
      %s65 = sadd.s32 %s64, 1
      %s66 = scalar_select %p63, %s64, %s65
      %p69 = pneg %p63
      %p70 = scmp.eq.s32.totalorder %s28, 1
      %p71 = por %p69, %p70
      %p72 = scmp.ne.s32.totalorder %s64, %s67
      %p73 = scmp.eq.s32.totalorder %s28, 0
      %p74 = por %p72, %p73
      %p75 = scmp.ne.s32.totalorder %s64, %s67
      %p76 = scmp.eq.s32.totalorder %s33, 1
      %p77 = por %p75, %p76
      %p78 = scmp.ne.s32.totalorder %s67, %s68
      %p79 = scmp.eq.s32.totalorder %s33, 0
      %p80 = por %p78, %p79
      %p81 = scmp.ne.s32.totalorder %s67, %s68
      %p82 = scmp.eq.s32.totalorder %s34, 1
      %p83 = por %p81, %p82
      %p85 = scmp.ne.s32.totalorder %s68, %s84
      %p86 = scmp.eq.s32.totalorder %s34, 0
      %p87 = por %p85, %p86
      %s88 = ssub.s32 %s28, %s35
      %p89 = scmp.eq.s32.totalorder %s88, 0
      %s91 = sadd.s32 %s90, 1
      %s92 = scalar_select %p89, %s90, %s91
      %p95 = pneg %p89
      %p96 = scmp.eq.s32.totalorder %s28, 1
      %p97 = por %p95, %p96
      %p98 = scmp.ne.s32.totalorder %s90, %s93
      %p99 = scmp.eq.s32.totalorder %s28, 0
      %p100 = por %p98, %p99
      %p101 = scmp.ne.s32.totalorder %s90, %s93
      %p102 = scmp.eq.s32.totalorder %s33, 1
      %p103 = por %p101, %p102
      %p104 = scmp.ne.s32.totalorder %s93, %s94
      %p105 = scmp.eq.s32.totalorder %s33, 0
      %p106 = por %p104, %p105
      %p107 = scmp.ne.s32.totalorder %s93, %s94
      %p108 = scmp.eq.s32.totalorder %s34, 1
      %p109 = por %p107, %p108
      %p111 = scmp.ne.s32.totalorder %s94, %s110
      %p112 = scmp.eq.s32.totalorder %s34, 0
      %p113 = por %p111, %p112
      %s115 = sadd.s32 %s114, 1
      %p118 = scmp.eq.s32.totalorder %s28, 1
      %p119 = scmp.ne.s32.totalorder %s114, %s116
      %p120 = scmp.eq.s32.totalorder %s28, 0
      %p121 = por %p119, %p120
      %p122 = scmp.ne.s32.totalorder %s114, %s116
      %p123 = scmp.eq.s32.totalorder %s33, 1
      %p124 = por %p122, %p123
      %p125 = scmp.ne.s32.totalorder %s116, %s117
      %p126 = scmp.eq.s32.totalorder %s33, 0
      %p127 = por %p125, %p126
      %p128 = scmp.ne.s32.totalorder %s116, %s117
      %p129 = scmp.eq.s32.totalorder %s34, 1
      %p130 = por %p128, %p129
      %p132 = scmp.ne.s32.totalorder %s117, %s131
      %p133 = scmp.eq.s32.totalorder %s34, 0
      %p134 = por %p132, %p133
      %s136 = sadd.s32 %s135, 1
      %p139 = scmp.eq.s32.totalorder %s28, 1
      %p140 = scmp.ne.s32.totalorder %s135, %s137
      %p141 = scmp.eq.s32.totalorder %s28, 0
      %p142 = por %p140, %p141
      %p143 = scmp.ne.s32.totalorder %s135, %s137
      %p144 = scmp.eq.s32.totalorder %s33, 1
      %p145 = por %p143, %p144
      %p146 = scmp.ne.s32.totalorder %s137, %s138
      %p147 = scmp.eq.s32.totalorder %s33, 0
      %p148 = por %p146, %p147
      %p149 = scmp.ne.s32.totalorder %s137, %s138
      %p150 = scmp.eq.s32.totalorder %s34, 1
      %p151 = por %p149, %p150
      %p153 = scmp.ne.s32.totalorder %s138, %s152
      %p154 = scmp.eq.s32.totalorder %s34, 0
      %p155 = por %p153, %p154
      %s157 = sadd.s32 %s156, 1
      %p160 = scmp.eq.s32.totalorder %s28, 1
      %p161 = scmp.ne.s32.totalorder %s156, %s158
      %p162 = scmp.eq.s32.totalorder %s28, 0
      %p163 = por %p161, %p162
      %p164 = scmp.ne.s32.totalorder %s156, %s158
      %p165 = scmp.eq.s32.totalorder %s33, 1
      %p166 = por %p164, %p165
      %p167 = scmp.ne.s32.totalorder %s158, %s159
      %p168 = scmp.eq.s32.totalorder %s33, 0
      %p169 = por %p167, %p168
      %p170 = scmp.ne.s32.totalorder %s158, %s159
      %p171 = scmp.eq.s32.totalorder %s34, 1
      %p172 = por %p170, %p171
      %p174 = scmp.ne.s32.totalorder %s159, %s173
      %p175 = scmp.eq.s32.totalorder %s34, 0
      %p176 = por %p174, %p175
      %s178 = sadd.s32 %s177, 1
      %p181 = scmp.eq.s32.totalorder %s28, 1
      %p182 = scmp.ne.s32.totalorder %s177, %s179
      %p183 = scmp.eq.s32.totalorder %s28, 0
      %p184 = por %p182, %p183
      %p185 = scmp.ne.s32.totalorder %s177, %s179
      %p186 = scmp.eq.s32.totalorder %s33, 1
      %p187 = por %p185, %p186
      %p188 = scmp.ne.s32.totalorder %s179, %s180
      %p189 = scmp.eq.s32.totalorder %s33, 0
      %p190 = por %p188, %p189
      %p191 = scmp.ne.s32.totalorder %s179, %s180
      %p192 = scmp.eq.s32.totalorder %s34, 1
      %p193 = por %p191, %p192
      %p195 = scmp.ne.s32.totalorder %s180, %s194
      %p196 = scmp.eq.s32.totalorder %s34, 0
      %p197 = por %p195, %p196
      %s199 = sadd.s32 %s198, 1
      %p202 = scmp.eq.s32.totalorder %s28, 1
      %p203 = scmp.ne.s32.totalorder %s198, %s200
      %p204 = scmp.eq.s32.totalorder %s28, 0
      %p205 = por %p203, %p204
      %p206 = scmp.ne.s32.totalorder %s198, %s200
      %p207 = scmp.eq.s32.totalorder %s33, 1
      %p208 = por %p206, %p207
      %p209 = scmp.ne.s32.totalorder %s200, %s201
      %p210 = scmp.eq.s32.totalorder %s33, 0
      %p211 = por %p209, %p210
      %p212 = scmp.ne.s32.totalorder %s200, %s201
      %p213 = scmp.eq.s32.totalorder %s34, 1
      %p214 = por %p212, %p213
      %p216 = scmp.ne.s32.totalorder %s201, %s215
      %p217 = scmp.eq.s32.totalorder %s34, 0
      %p218 = por %p216, %p217
      %s220 = sadd.s32 %s219, 1
      %p223 = scmp.eq.s32.totalorder %s28, 1
      %p224 = scmp.ne.s32.totalorder %s219, %s221
      %p225 = scmp.eq.s32.totalorder %s28, 0
      %p226 = por %p224, %p225
      %p227 = scmp.ne.s32.totalorder %s219, %s221
      %p228 = scmp.eq.s32.totalorder %s33, 1
      %p229 = por %p227, %p228
      %p230 = scmp.ne.s32.totalorder %s221, %s222
      %p231 = scmp.eq.s32.totalorder %s33, 0
      %p232 = por %p230, %p231
      %p233 = scmp.ne.s32.totalorder %s221, %s222
      %p234 = scmp.eq.s32.totalorder %s34, 1
      %p235 = por %p233, %p234
      %p237 = scmp.ne.s32.totalorder %s222, %s236
      %p238 = scmp.eq.s32.totalorder %s34, 0
      %p239 = por %p237, %p238
      %s241 = sadd.s32 %s240, 1
      %p244 = scmp.eq.s32.totalorder %s28, 1
      %p245 = scmp.ne.s32.totalorder %s240, %s242
      %p246 = scmp.eq.s32.totalorder %s28, 0
      %p247 = por %p245, %p246
      %p248 = scmp.ne.s32.totalorder %s240, %s242
      %p249 = scmp.eq.s32.totalorder %s33, 1
      %p250 = por %p248, %p249
      %p251 = scmp.ne.s32.totalorder %s242, %s243
      %p252 = scmp.eq.s32.totalorder %s33, 0
      %p253 = por %p251, %p252
      %p254 = scmp.ne.s32.totalorder %s242, %s243
      %p255 = scmp.eq.s32.totalorder %s34, 1
      %p256 = por %p254, %p255
      %p258 = scmp.ne.s32.totalorder %s243, %s257
      %p259 = scmp.eq.s32.totalorder %s34, 0
      %p260 = por %p258, %p259
      %s262 = sadd.s32 %s261, 1
      %p265 = scmp.eq.s32.totalorder %s28, 1
      %p266 = scmp.ne.s32.totalorder %s261, %s263
      %p267 = scmp.eq.s32.totalorder %s28, 0
      %p268 = por %p266, %p267
      %p269 = scmp.ne.s32.totalorder %s261, %s263
      %p270 = scmp.eq.s32.totalorder %s33, 1
      %p271 = por %p269, %p270
      %p272 = scmp.ne.s32.totalorder %s263, %s264
      %p273 = scmp.eq.s32.totalorder %s33, 0
      %p274 = por %p272, %p273
      %p275 = scmp.ne.s32.totalorder %s263, %s264
      %p276 = scmp.eq.s32.totalorder %s34, 1
      %p277 = por %p275, %p276
      %p279 = scmp.ne.s32.totalorder %s264, %s278
      %p280 = scmp.eq.s32.totalorder %s34, 0
      %p281 = por %p279, %p280
      %s282 = ssub.s32 %s28, %s35
      %p283 = scmp.eq.s32.totalorder %s282, 0
      %s285 = sadd.s32 %s284, 1
      %s286 = scalar_select %p283, %s284, %s285
      %p289 = pneg %p283
      %p290 = scmp.eq.s32.totalorder %s28, 1
      %p291 = por %p289, %p290
      %p292 = scmp.ne.s32.totalorder %s284, %s287
      %p293 = scmp.eq.s32.totalorder %s28, 0
      %p294 = por %p292, %p293
      %p295 = scmp.ne.s32.totalorder %s284, %s287
      %p296 = scmp.eq.s32.totalorder %s33, 1
      %p297 = por %p295, %p296
      %p298 = scmp.ne.s32.totalorder %s287, %s288
      %p299 = scmp.eq.s32.totalorder %s33, 0
      %p300 = por %p298, %p299
      %p301 = scmp.ne.s32.totalorder %s287, %s288
      %p302 = scmp.eq.s32.totalorder %s34, 1
      %p303 = por %p301, %p302
      %p305 = scmp.ne.s32.totalorder %s288, %s304
      %p306 = scmp.eq.s32.totalorder %s34, 0
      %p307 = por %p305, %p306
      %p308 = scmp.le.s32.totalorder 1, %s28
      %p309 = scmp.lt.s32.totalorder %s28, 3
      %p310 = pnand %p308, %p309
      %p311 = pneg %p310
      // Predicated region
      $region9: #{tpu_custom_call.1} parent=5 // pred_check
        _
      $region10: #{tpu_custom_call.1} parent=5 // pred_check_branch
        %313 = sbr.rel (%p310) target = $region12
      $region11: #{tpu_custom_call.1} parent=5 // pred_region
        %s314 = ssub.s32 %s28, 1
        // Predicated region
        $region13: #{tpu_custom_call.1} parent=11 // pred_check
          %p315 = pneg %p127
        $region14: #{tpu_custom_call.1} parent=11 // pred_check_branch
          %317 = sbr.rel (%p315) target = $region16
        $region15: #{tpu_custom_call.1} parent=11 // pred_region
          %s319 = ssub.s32 4096, 4096
          %320 = vsyncadd [#allocation10], %s319
          %s321 = sshll.u32 [#allocation9], 4
          %s322 = int_to_ptr.vmem [resolvable:$true] %s321
          %327 = dma.hbm_to_vmem [thread:$0]  %s3, 4096, %s322, [#allocation10], 128, 128, 8
        $region16: #{tpu_custom_call.1} parent=11 // pred_fallthru
          _
        // Predicated region
        $region17: #{tpu_custom_call.1} parent=11 // pred_check
          %p328 = pneg %p148
        $region18: #{tpu_custom_call.1} parent=11 // pred_check_branch
          %330 = sbr.rel (%p328) target = $region20
        $region19: #{tpu_custom_call.1} parent=11 // pred_region
          _
        $region20: #{tpu_custom_call.1} parent=11 // pred_fallthru
          _
        // Predicated region
        $region21: #{tpu_custom_call.1} parent=11 // pred_check
          %p331 = pneg %p169
        $region22: #{tpu_custom_call.1} parent=11 // pred_check_branch
          %333 = sbr.rel (%p331) target = $region24
        $region23: #{tpu_custom_call.1} parent=11 // pred_region
          %s335 = ssub.s32 4096, 4096
          %336 = vsyncadd [#allocation10], %s335
          %s337 = sshll.u32 [#allocation11], 4
          %s338 = int_to_ptr.vmem [resolvable:$true] %s337
          %343 = dma.hbm_to_vmem [thread:$0]  %s5, 4096, %s338, [#allocation10], 128, 128, 8
        $region24: #{tpu_custom_call.1} parent=11 // pred_fallthru
          _
        // Predicated region
        $region25: #{tpu_custom_call.1} parent=11 // pred_check
          %p344 = pneg %p190
        $region26: #{tpu_custom_call.1} parent=11 // pred_check_branch
          %346 = sbr.rel (%p344) target = $region28
        $region27: #{tpu_custom_call.1} parent=11 // pred_region
          _
        $region28: #{tpu_custom_call.1} parent=11 // pred_fallthru
          _
        // Predicated region
        $region29: #{tpu_custom_call.1} parent=11 // pred_check
          %p347 = pneg %p211
        $region30: #{tpu_custom_call.1} parent=11 // pred_check_branch
          %349 = sbr.rel (%p347) target = $region32
        $region31: #{tpu_custom_call.1} parent=11 // pred_region
          %s351 = ssub.s32 4096, 4096
          %352 = vsyncadd [#allocation13], %s351
          %s353 = sshll.u32 [#allocation12], 4
          %s354 = int_to_ptr.vmem [resolvable:$true] %s353
          %359 = dma.hbm_to_vmem [thread:$0]  %s7, 4096, %s354, [#allocation13], 128, 128, 8
        $region32: #{tpu_custom_call.1} parent=11 // pred_fallthru
          _
        // Predicated region
        $region33: #{tpu_custom_call.1} parent=11 // pred_check
          %p360 = pneg %p232
        $region34: #{tpu_custom_call.1} parent=11 // pred_check_branch
          %362 = sbr.rel (%p360) target = $region36
        $region35: #{tpu_custom_call.1} parent=11 // pred_region
          _
        $region36: #{tpu_custom_call.1} parent=11 // pred_fallthru
          _
        // Predicated region
        $region37: #{tpu_custom_call.1} parent=11 // pred_check
          %p363 = pneg %p253
        $region38: #{tpu_custom_call.1} parent=11 // pred_check_branch
          %365 = sbr.rel (%p363) target = $region40
        $region39: #{tpu_custom_call.1} parent=11 // pred_region
          %s367 = ssub.s32 4096, 4096
          %368 = vsyncadd [#allocation13], %s367
          %s369 = sshll.u32 [#allocation14], 4
          %s370 = int_to_ptr.vmem [resolvable:$true] %s369
          %375 = dma.hbm_to_vmem [thread:$0]  %s9, 4096, %s370, [#allocation13], 128, 128, 8
        $region40: #{tpu_custom_call.1} parent=11 // pred_fallthru
          _
        // Predicated region
        $region41: #{tpu_custom_call.1} parent=11 // pred_check
          %p376 = pneg %p274
        $region42: #{tpu_custom_call.1} parent=11 // pred_check_branch
          %378 = sbr.rel (%p376) target = $region44
        $region43: #{tpu_custom_call.1} parent=11 // pred_region
          _
        $region44: #{tpu_custom_call.1} parent=11 // pred_fallthru
          _
      $region12: #{tpu_custom_call.1} parent=5 // pred_fallthru
        _
      %p379 = scmp.lt.s32.totalorder %s28, 2
      // Predicated region
      $region45: #{tpu_custom_call.1} parent=5 // pred_check
        %p380 = pneg %p379
      $region46: #{tpu_custom_call.1} parent=5 // pred_check_branch
        %382 = sbr.rel (%p380) target = $region48
      $region47: #{tpu_custom_call.1} parent=5 // pred_region
        // Predicated region
        $region49: #{tpu_custom_call.1} parent=47 // pred_check
          %p383 = pneg %p48
        $region50: #{tpu_custom_call.1} parent=47 // pred_check_branch
          %385 = sbr.rel (%p383) target = $region52
        $region51: #{tpu_custom_call.1} parent=47 // pred_region
          %s386 = sand.u32 %s38, 1
          %s387 = scalar_lea.sflag [#allocation4], %s386
          %s388 = sand.u32 %s38, 1
          %s389 = smul.addr %s388, 32
          %s390 = scalar_lea.vmem [#allocation3], %s389
          %s391 = smul.u32 2, %s28
          %s393 = ssub.s32 512, 512
          %394 = vsyncadd %s387, %s393
          %s395 = smul.addr %s391, 2
          %s396 = smul.addr %s395, 128
          %s397 = scalar_lea.hbm %s0, %s396
          %s398 = sshll.u32 %s390, 4
          %s399 = int_to_ptr.vmem [resolvable:$true] %s398
          %404 = dma.hbm_to_vmem [thread:$0]  %s397, 512, %s399, %s387, 256, 256, 16
        $region52: #{tpu_custom_call.1} parent=47 // pred_fallthru
          _
        // Predicated region
        $region53: #{tpu_custom_call.1} parent=47 // pred_check
          %p405 = pneg %p74
        $region54: #{tpu_custom_call.1} parent=47 // pred_check_branch
          %407 = sbr.rel (%p405) target = $region56
        $region55: #{tpu_custom_call.1} parent=47 // pred_region
          %s408 = sand.u32 %s28, 1
          %s409 = scalar_lea.sflag [#allocation7], %s408
          %s410 = sand.u32 %s64, 1
          %s411 = smul.addr %s410, 32
          %s412 = scalar_lea.vmem [#allocation6], %s411
          %s413 = smul.u32 2, %s28
          %s415 = ssub.s32 512, 512
          %416 = vsyncadd %s409, %s415
          %s417 = smul.addr %s413, 2
          %s418 = smul.addr %s417, 128
          %s419 = scalar_lea.hbm %s1, %s418
          %s420 = sshll.u32 %s412, 4
          %s421 = int_to_ptr.vmem [resolvable:$true] %s420
          %426 = dma.hbm_to_vmem [thread:$0]  %s419, 512, %s421, %s409, 256, 256, 16
        $region56: #{tpu_custom_call.1} parent=47 // pred_fallthru
          _
        // Predicated region
        $region57: #{tpu_custom_call.1} parent=47 // pred_check
          %p427 = pneg %p100
        $region58: #{tpu_custom_call.1} parent=47 // pred_check_branch
          %429 = sbr.rel (%p427) target = $region60
        $region59: #{tpu_custom_call.1} parent=47 // pred_region
          %s430 = sand.u32 %s28, 1
          %s431 = scalar_lea.sflag [#allocation7], %s430
          %s432 = sand.u32 %s90, 1
          %s433 = smul.addr %s432, 32
          %s434 = scalar_lea.vmem [#allocation8], %s433
          %s435 = smul.u32 2, %s28
          %s437 = ssub.s32 512, 512
          %438 = vsyncadd %s431, %s437
          %s439 = smul.addr %s435, 2
          %s440 = smul.addr %s439, 128
          %s441 = scalar_lea.hbm %s2, %s440
          %s442 = sshll.u32 %s434, 4
          %s443 = int_to_ptr.vmem [resolvable:$true] %s442
          %448 = dma.hbm_to_vmem [thread:$0]  %s441, 512, %s443, %s431, 256, 256, 16
        $region60: #{tpu_custom_call.1} parent=47 // pred_fallthru
          _
      $region48: #{tpu_custom_call.1} parent=5 // pred_fallthru
        _
      %p449 = scmp.le.s32.totalorder 1, %s28
      %p450 = scmp.lt.s32.totalorder %s28, 3
      %p451 = pnand %p449, %p450
      %p452 = pneg %p451
      // Predicated region
      $region61: #{tpu_custom_call.1} parent=5 // pred_check
        _
      $region62: #{tpu_custom_call.1} parent=5 // pred_check_branch
        %454 = sbr.rel (%p451) target = $region64
      $region63: #{tpu_custom_call.1} parent=5 // pred_region
        %s455 = ssub.s32 %s28, 1
        %s456 = sand.u32 %s41, 1
        %s457 = scalar_lea.sflag [#allocation4], %s456
        %s458 = sand.u32 %s41, 1
        %s459 = smul.addr %s458, 32
        %s460 = scalar_lea.vmem [#allocation3], %s459
        // Predicated region
        $region65: #{tpu_custom_call.1} parent=63 // pred_check
          %p461 = pneg %p54
        $region66: #{tpu_custom_call.1} parent=63 // pred_check_branch
          %463 = sbr.rel (%p461) target = $region68
        $region67: #{tpu_custom_call.1} parent=63 // pred_region
          %464 = dma.done %s457, 512
        $region68: #{tpu_custom_call.1} parent=63 // pred_fallthru
          _
        %s465 = sand.u32 %s33, 1
        %s466 = scalar_lea.sflag [#allocation7], %s465
        %s467 = sand.u32 %s67, 1
        %s468 = smul.addr %s467, 32
        %s469 = scalar_lea.vmem [#allocation6], %s468
        // Predicated region
        $region69: #{tpu_custom_call.1} parent=63 // pred_check
          %p470 = pneg %p80
        $region70: #{tpu_custom_call.1} parent=63 // pred_check_branch
          %472 = sbr.rel (%p470) target = $region72
        $region71: #{tpu_custom_call.1} parent=63 // pred_region
          %473 = dma.done %s466, 512
        $region72: #{tpu_custom_call.1} parent=63 // pred_fallthru
          _
        %s474 = sand.u32 %s33, 1
        %s475 = scalar_lea.sflag [#allocation7], %s474
        %s476 = sand.u32 %s93, 1
        %s477 = smul.addr %s476, 32
        %s478 = scalar_lea.vmem [#allocation8], %s477
        // Predicated region
        $region73: #{tpu_custom_call.1} parent=63 // pred_check
          %p479 = pneg %p106
        $region74: #{tpu_custom_call.1} parent=63 // pred_check_branch
          %481 = sbr.rel (%p479) target = $region76
        $region75: #{tpu_custom_call.1} parent=63 // pred_region
          %482 = dma.done %s475, 512
        $region76: #{tpu_custom_call.1} parent=63 // pred_fallthru
          _
        // Predicated region
        $region77: #{tpu_custom_call.1} parent=63 // pred_check
          %p483 = pneg %p127
        $region78: #{tpu_custom_call.1} parent=63 // pred_check_branch
          %485 = sbr.rel (%p483) target = $region80
        $region79: #{tpu_custom_call.1} parent=63 // pred_region
          %486 = dma.done [#allocation10], 4096
        $region80: #{tpu_custom_call.1} parent=63 // pred_fallthru
          _
        // Predicated region
        $region81: #{tpu_custom_call.1} parent=63 // pred_check
          %p487 = pneg %p169
        $region82: #{tpu_custom_call.1} parent=63 // pred_check_branch
          %489 = sbr.rel (%p487) target = $region84
        $region83: #{tpu_custom_call.1} parent=63 // pred_region
          %490 = dma.done [#allocation10], 4096
        $region84: #{tpu_custom_call.1} parent=63 // pred_fallthru
          _
        // Predicated region
        $region85: #{tpu_custom_call.1} parent=63 // pred_check
          %p491 = pneg %p211
        $region86: #{tpu_custom_call.1} parent=63 // pred_check_branch
          %493 = sbr.rel (%p491) target = $region88
        $region87: #{tpu_custom_call.1} parent=63 // pred_region
          %494 = dma.done [#allocation13], 4096
        $region88: #{tpu_custom_call.1} parent=63 // pred_fallthru
          _
        // Predicated region
        $region89: #{tpu_custom_call.1} parent=63 // pred_check
          %p495 = pneg %p253
        $region90: #{tpu_custom_call.1} parent=63 // pred_check_branch
          %497 = sbr.rel (%p495) target = $region92
        $region91: #{tpu_custom_call.1} parent=63 // pred_region
          %498 = dma.done [#allocation13], 4096
        $region92: #{tpu_custom_call.1} parent=63 // pred_fallthru
          _
        %s499 = sand.u32 %s41, 1
        %s500 = scalar_lea.sflag [#allocation4], %s499
        %s501 = sand.u32 %s41, 1
        %s502 = smul.addr %s501, 32
        %s503 = scalar_lea.vmem [#allocation3], %s502
        %p504 = pneg %p54
        %p505 = pneg %p51
        %s506 = sand.u32 %s33, 1
        %s507 = scalar_lea.sflag [#allocation7], %s506
        %s508 = sand.u32 %s67, 1
        %s509 = smul.addr %s508, 32
        %s510 = scalar_lea.vmem [#allocation6], %s509
        %p511 = pneg %p80
        %p512 = pneg %p77
        %s513 = sand.u32 %s33, 1
        %s514 = scalar_lea.sflag [#allocation7], %s513
        %s515 = sand.u32 %s93, 1
        %s516 = smul.addr %s515, 32
        %s517 = scalar_lea.vmem [#allocation8], %s516
        %p518 = pneg %p106
        %p519 = pneg %p103
        %p520 = pneg %p127
        %p521 = pneg %p124
        %p522 = pneg %p148
        %p523 = pneg %p145
        %p524 = pneg %p169
        %p525 = pneg %p166
        %p526 = pneg %p190
        %p527 = pneg %p187
        %p528 = pneg %p211
        %p529 = pneg %p208
        %p530 = pneg %p232
        %p531 = pneg %p229
        %p532 = pneg %p253
        %p533 = pneg %p250
        %p534 = pneg %p274
        %p535 = pneg %p271
        %p536 = pneg %p300
        %p537 = pneg %p297
        %s538 = sand.u32 %s287, 1
        %s539 = scalar_lea.sflag [#allocation5], %s538
        %s540 = sand.u32 %s287, 1
        %s541 = smul.addr %s540, 32
        %s542 = scalar_lea.vmem [#allocation15], %s541
        %s543 = smul.u32 2, %s33
        %s544 = smul.u32 2, %s33
        %s545 = smul.u32 2, %s33
        %s546 = smul.u32 2, %s33
        %v548 = vld [vmem:[%s460] sm:$0xff]
        %v549 = vld [vmem:[%s460 + $0x8] sm:$0xff]
        %v550 = vld [vmem:[%s460 + $0x10] sm:$0xff]
        %v551 = vld [vmem:[%s460 + $0x18] sm:$0xff]
        %v552 = vpack.c.bf16 %v550, %v548
        %v553 = vpack.c.bf16 %v551, %v549
        %v554 = vld [vmem:[%s469] sm:$0xff]
        %v555 = vld [vmem:[%s469 + $0x8] sm:$0xff]
        %v556 = vld [vmem:[%s469 + $0x10] sm:$0xff]
        %v557 = vld [vmem:[%s469 + $0x18] sm:$0xff]
        %v558 = vpack.c.bf16 %v556, %v554
        %v559 = vpack.c.bf16 %v557, %v555
        %v560 = vld [vmem:[%s478] sm:$0xff]
        %v561 = vld [vmem:[%s478 + $0x8] sm:$0xff]
        %v562 = vld [vmem:[%s478 + $0x10] sm:$0xff]
        %v563 = vld [vmem:[%s478 + $0x18] sm:$0xff]
        %v564 = vpack.c.bf16 %v562, %v560
        %v565 = vpack.c.bf16 %v563, %v561
        %v566 = vld [vmem:[#allocation9] sm:$0xff]
        %v567 = vld [vmem:[#allocation9 + $0x8] sm:$0xff]
        %v568 = vld [vmem:[#allocation9 + $0x10] sm:$0xff]
        %v569 = vld [vmem:[#allocation9 + $0x18] sm:$0xff]
        %v570 = vld [vmem:[#allocation9 + $0x20] sm:$0xff]
        %v571 = vld [vmem:[#allocation9 + $0x28] sm:$0xff]
        %v572 = vld [vmem:[#allocation9 + $0x30] sm:$0xff]
        %v573 = vld [vmem:[#allocation9 + $0x38] sm:$0xff]
        %v574 = vld [vmem:[#allocation9 + $0x40] sm:$0xff]
        %v575 = vld [vmem:[#allocation9 + $0x48] sm:$0xff]
        %v576 = vld [vmem:[#allocation9 + $0x50] sm:$0xff]
        %v577 = vld [vmem:[#allocation9 + $0x58] sm:$0xff]
        %v578 = vld [vmem:[#allocation9 + $0x60] sm:$0xff]
        %v579 = vld [vmem:[#allocation9 + $0x68] sm:$0xff]
        %v580 = vld [vmem:[#allocation9 + $0x70] sm:$0xff]
        %v581 = vld [vmem:[#allocation9 + $0x78] sm:$0xff]
        %v582 = vld [vmem:[#allocation9 + $0x80] sm:$0xff]
        %v583 = vld [vmem:[#allocation9 + $0x88] sm:$0xff]
        %v584 = vld [vmem:[#allocation9 + $0x90] sm:$0xff]
        %v585 = vld [vmem:[#allocation9 + $0x98] sm:$0xff]
        %v586 = vld [vmem:[#allocation9 + $0xa0] sm:$0xff]
        %v587 = vld [vmem:[#allocation9 + $0xa8] sm:$0xff]
        %v588 = vld [vmem:[#allocation9 + $0xb0] sm:$0xff]
        %v589 = vld [vmem:[#allocation9 + $0xb8] sm:$0xff]
        %v590 = vld [vmem:[#allocation9 + $0xc0] sm:$0xff]
        %v591 = vld [vmem:[#allocation9 + $0xc8] sm:$0xff]
        %v592 = vld [vmem:[#allocation9 + $0xd0] sm:$0xff]
        %v593 = vld [vmem:[#allocation9 + $0xd8] sm:$0xff]
        %v594 = vld [vmem:[#allocation9 + $0xe0] sm:$0xff]
        %v595 = vld [vmem:[#allocation9 + $0xe8] sm:$0xff]
        %v596 = vld [vmem:[#allocation9 + $0xf0] sm:$0xff]
        %v597 = vld [vmem:[#allocation9 + $0xf8] sm:$0xff]
        %v598 = vld [vmem:[%s4] sm:$0x3]
        %v600 = vlaneseq
        %v601 = vshrl.u32 %v600, 7
        %v602 = vsub.s32 0, %v601
        %v603 = vrot.slane %v598, %v602
        %v604 = vlaneseq
        %v605 = vshrl.u32 %v604, 7
        %v606 = vsub.s32 1, %v605
        %v607 = vrot.slane %v598, %v606
        %v642 = vunpack.c.l.b16 %v566
        %v643 = vunpack.c.h.b16 %v566
        %v644 = vunpack.c.l.b16 %v567
        %v645 = vunpack.c.h.b16 %v567
        %v646 = vunpack.c.l.b16 %v568
        %v647 = vunpack.c.h.b16 %v568
        %v648 = vunpack.c.l.b16 %v569
        %v649 = vunpack.c.h.b16 %v569
        %v650 = vunpack.c.l.b16 %v570
        %v651 = vunpack.c.h.b16 %v570
        %v652 = vunpack.c.l.b16 %v571
        %v653 = vunpack.c.h.b16 %v571
        %v654 = vunpack.c.l.b16 %v572
        %v655 = vunpack.c.h.b16 %v572
        %v656 = vunpack.c.l.b16 %v573
        %v657 = vunpack.c.h.b16 %v573
        %v658 = vunpack.c.l.b16 %v574
        %v659 = vunpack.c.h.b16 %v574
        %v660 = vunpack.c.l.b16 %v575
        %v661 = vunpack.c.h.b16 %v575
        %v662 = vunpack.c.l.b16 %v576
        %v663 = vunpack.c.h.b16 %v576
        %v664 = vunpack.c.l.b16 %v577
        %v665 = vunpack.c.h.b16 %v577
        %v666 = vunpack.c.l.b16 %v578
        %v667 = vunpack.c.h.b16 %v578
        %v668 = vunpack.c.l.b16 %v579
        %v669 = vunpack.c.h.b16 %v579
        %v670 = vunpack.c.l.b16 %v580
        %v671 = vunpack.c.h.b16 %v580
        %v672 = vunpack.c.l.b16 %v581
        %v673 = vunpack.c.h.b16 %v581
        %v674 = vunpack.c.l.b16 %v582
        %v675 = vunpack.c.h.b16 %v582
        %v676 = vunpack.c.l.b16 %v583
        %v677 = vunpack.c.h.b16 %v583
        %v678 = vunpack.c.l.b16 %v584
        %v679 = vunpack.c.h.b16 %v584
        %v680 = vunpack.c.l.b16 %v585
        %v681 = vunpack.c.h.b16 %v585
        %v682 = vunpack.c.l.b16 %v586
        %v683 = vunpack.c.h.b16 %v586
        %v684 = vunpack.c.l.b16 %v587
        %v685 = vunpack.c.h.b16 %v587
        %v686 = vunpack.c.l.b16 %v588
        %v687 = vunpack.c.h.b16 %v588
        %v688 = vunpack.c.l.b16 %v589
        %v689 = vunpack.c.h.b16 %v589
        %v690 = vunpack.c.l.b16 %v590
        %v691 = vunpack.c.h.b16 %v590
        %v692 = vunpack.c.l.b16 %v591
        %v693 = vunpack.c.h.b16 %v591
        %v694 = vunpack.c.l.b16 %v592
        %v695 = vunpack.c.h.b16 %v592
        %v696 = vunpack.c.l.b16 %v593
        %v697 = vunpack.c.h.b16 %v593
        %v698 = vunpack.c.l.b16 %v594
        %v699 = vunpack.c.h.b16 %v594
        %v700 = vunpack.c.l.b16 %v595
        %v701 = vunpack.c.h.b16 %v595
        %v702 = vunpack.c.l.b16 %v596
        %v703 = vunpack.c.h.b16 %v596
        %v704 = vunpack.c.l.b16 %v597
        %v705 = vunpack.c.h.b16 %v597
        %v706 = vpack.c.b16 %v644, %v642
        %v707 = vpack.c.b16 %v645, %v643
        %v708 = vpack.c.b16 %v648, %v646
        %v709 = vpack.c.b16 %v649, %v647
        %v710 = vpack.c.b16 %v652, %v650
        %v711 = vpack.c.b16 %v653, %v651
        %v712 = vpack.c.b16 %v656, %v654
        %v713 = vpack.c.b16 %v657, %v655
        %v714 = vpack.c.b16 %v660, %v658
        %v715 = vpack.c.b16 %v661, %v659
        %v716 = vpack.c.b16 %v664, %v662
        %v717 = vpack.c.b16 %v665, %v663
        %v718 = vpack.c.b16 %v668, %v666
        %v719 = vpack.c.b16 %v669, %v667
        %v720 = vpack.c.b16 %v672, %v670
        %v721 = vpack.c.b16 %v673, %v671
        %v722 = vpack.c.b16 %v676, %v674
        %v723 = vpack.c.b16 %v677, %v675
        %v724 = vpack.c.b16 %v680, %v678
        %v725 = vpack.c.b16 %v681, %v679
        %v726 = vpack.c.b16 %v684, %v682
        %v727 = vpack.c.b16 %v685, %v683
        %v728 = vpack.c.b16 %v688, %v686
        %v729 = vpack.c.b16 %v689, %v687
        %v730 = vpack.c.b16 %v692, %v690
        %v731 = vpack.c.b16 %v693, %v691
        %v732 = vpack.c.b16 %v696, %v694
        %v733 = vpack.c.b16 %v697, %v695
        %v734 = vpack.c.b16 %v700, %v698
        %v735 = vpack.c.b16 %v701, %v699
        %v736 = vpack.c.b16 %v704, %v702
        %v737 = vpack.c.b16 %v705, %v703
        %770 = vmatprep.subr.bf16.mxu0 %v707
        %771 = vmatpush1.bf16.msra.mxu0 %v706
        %772 = vmatprep.subr.bf16.mxu0 %v709
        %773 = vmatpush1.bf16.msra.mxu0 %v708
        %774 = vmatprep.subr.bf16.mxu0 %v711
        %775 = vmatpush1.bf16.msra.mxu0 %v710
        %776 = vmatprep.subr.bf16.mxu0 %v713
        %777 = vmatpush1.bf16.msra.mxu0 %v712
        %778 = vmatprep.subr.bf16.mxu0 %v715
        %779 = vmatpush1.bf16.msra.mxu0 %v714
        %780 = vmatprep.subr.bf16.mxu0 %v717
        %781 = vmatpush1.bf16.msra.mxu0 %v716
        %782 = vmatprep.subr.bf16.mxu0 %v719
        %783 = vmatpush1.bf16.msra.mxu0 %v718
        %784 = vmatprep.subr.bf16.mxu0 %v721
        %785 = vmatpush1.bf16.msra.mxu0 %v720
        %786 = vmatprep.subr.bf16.mxu0 %v723
        %787 = vmatpush1.bf16.msra.mxu0 %v722
        %788 = vmatprep.subr.bf16.mxu0 %v725
        %789 = vmatpush1.bf16.msra.mxu0 %v724
        %790 = vmatprep.subr.bf16.mxu0 %v727
        %791 = vmatpush1.bf16.msra.mxu0 %v726
        %792 = vmatprep.subr.bf16.mxu0 %v729
        %793 = vmatpush1.bf16.msra.mxu0 %v728
        %794 = vmatprep.subr.bf16.mxu0 %v731
        %795 = vmatpush1.bf16.msra.mxu0 %v730
        %796 = vmatprep.subr.bf16.mxu0 %v733
        %797 = vmatpush1.bf16.msra.mxu0 %v732
        %798 = vmatprep.subr.bf16.mxu0 %v735
        %799 = vmatpush1.bf16.msra.mxu0 %v734
        %800 = vmatprep.subr.bf16.mxu0 %v737
        %801 = vmatpush1.bf16.msra.mxu0 %v736
        %802 = vmatprep.mubr.bf16.mxu0 %v553
        %803 = vmatmul.mubr.bf16.gmra.mrb[0].mxu0 %v552
        %v804 = vpop.f32.mrb[0].mxu0
        %v805 = vadd.f32 %v603, %v804
        %v806 = vpop.f32.mrb[0].mxu0
        %v807 = vadd.f32 %v607, %v806
        %v808 = vpop.f32.mrb[0].mxu0
        %v809 = vadd.f32 %v603, %v808
        %v810 = vpop.f32.mrb[0].mxu0
        %v811 = vadd.f32 %v607, %v810
        %812 = vdwg.mxu0
        %v813 = vld [vmem:[#allocation11] sm:$0xff]
        %v814 = vld [vmem:[#allocation11 + $0x8] sm:$0xff]
        %v815 = vld [vmem:[#allocation11 + $0x10] sm:$0xff]
        %v816 = vld [vmem:[#allocation11 + $0x18] sm:$0xff]
        %v817 = vld [vmem:[#allocation11 + $0x20] sm:$0xff]
        %v818 = vld [vmem:[#allocation11 + $0x28] sm:$0xff]
        %v819 = vld [vmem:[#allocation11 + $0x30] sm:$0xff]
        %v820 = vld [vmem:[#allocation11 + $0x38] sm:$0xff]
        %v821 = vld [vmem:[#allocation11 + $0x40] sm:$0xff]
        %v822 = vld [vmem:[#allocation11 + $0x48] sm:$0xff]
        %v823 = vld [vmem:[#allocation11 + $0x50] sm:$0xff]
        %v824 = vld [vmem:[#allocation11 + $0x58] sm:$0xff]
        %v825 = vld [vmem:[#allocation11 + $0x60] sm:$0xff]
        %v826 = vld [vmem:[#allocation11 + $0x68] sm:$0xff]
        %v827 = vld [vmem:[#allocation11 + $0x70] sm:$0xff]
        %v828 = vld [vmem:[#allocation11 + $0x78] sm:$0xff]
        %v829 = vld [vmem:[#allocation11 + $0x80] sm:$0xff]
        %v830 = vld [vmem:[#allocation11 + $0x88] sm:$0xff]
        %v831 = vld [vmem:[#allocation11 + $0x90] sm:$0xff]
        %v832 = vld [vmem:[#allocation11 + $0x98] sm:$0xff]
        %v833 = vld [vmem:[#allocation11 + $0xa0] sm:$0xff]
        %v834 = vld [vmem:[#allocation11 + $0xa8] sm:$0xff]
        %v835 = vld [vmem:[#allocation11 + $0xb0] sm:$0xff]
        %v836 = vld [vmem:[#allocation11 + $0xb8] sm:$0xff]
        %v837 = vld [vmem:[#allocation11 + $0xc0] sm:$0xff]
        %v838 = vld [vmem:[#allocation11 + $0xc8] sm:$0xff]
        %v839 = vld [vmem:[#allocation11 + $0xd0] sm:$0xff]
        %v840 = vld [vmem:[#allocation11 + $0xd8] sm:$0xff]
        %v841 = vld [vmem:[#allocation11 + $0xe0] sm:$0xff]
        %v842 = vld [vmem:[#allocation11 + $0xe8] sm:$0xff]
        %v843 = vld [vmem:[#allocation11 + $0xf0] sm:$0xff]
        %v844 = vld [vmem:[#allocation11 + $0xf8] sm:$0xff]
        %v845 = vld [vmem:[%s6] sm:$0x3]
        %v847 = vlaneseq
        %v848 = vshrl.u32 %v847, 7
        %v849 = vsub.s32 0, %v848
        %v850 = vrot.slane %v845, %v849
        %v851 = vlaneseq
        %v852 = vshrl.u32 %v851, 7
        %v853 = vsub.s32 1, %v852
        %v854 = vrot.slane %v845, %v853
        %v889 = vunpack.c.l.b16 %v813
        %v890 = vunpack.c.h.b16 %v813
        %v891 = vunpack.c.l.b16 %v814
        %v892 = vunpack.c.h.b16 %v814
        %v893 = vunpack.c.l.b16 %v815
        %v894 = vunpack.c.h.b16 %v815
        %v895 = vunpack.c.l.b16 %v816
        %v896 = vunpack.c.h.b16 %v816
        %v897 = vunpack.c.l.b16 %v817
        %v898 = vunpack.c.h.b16 %v817
        %v899 = vunpack.c.l.b16 %v818
        %v900 = vunpack.c.h.b16 %v818
        %v901 = vunpack.c.l.b16 %v819
        %v902 = vunpack.c.h.b16 %v819
        %v903 = vunpack.c.l.b16 %v820
        %v904 = vunpack.c.h.b16 %v820
        %v905 = vunpack.c.l.b16 %v821
        %v906 = vunpack.c.h.b16 %v821
        %v907 = vunpack.c.l.b16 %v822
        %v908 = vunpack.c.h.b16 %v822
        %v909 = vunpack.c.l.b16 %v823
        %v910 = vunpack.c.h.b16 %v823
        %v911 = vunpack.c.l.b16 %v824
        %v912 = vunpack.c.h.b16 %v824
        %v913 = vunpack.c.l.b16 %v825
        %v914 = vunpack.c.h.b16 %v825
        %v915 = vunpack.c.l.b16 %v826
        %v916 = vunpack.c.h.b16 %v826
        %v917 = vunpack.c.l.b16 %v827
        %v918 = vunpack.c.h.b16 %v827
        %v919 = vunpack.c.l.b16 %v828
        %v920 = vunpack.c.h.b16 %v828
        %v921 = vunpack.c.l.b16 %v829
        %v922 = vunpack.c.h.b16 %v829
        %v923 = vunpack.c.l.b16 %v830
        %v924 = vunpack.c.h.b16 %v830
        %v925 = vunpack.c.l.b16 %v831
        %v926 = vunpack.c.h.b16 %v831
        %v927 = vunpack.c.l.b16 %v832
        %v928 = vunpack.c.h.b16 %v832
        %v929 = vunpack.c.l.b16 %v833
        %v930 = vunpack.c.h.b16 %v833
        %v931 = vunpack.c.l.b16 %v834
        %v932 = vunpack.c.h.b16 %v834
        %v933 = vunpack.c.l.b16 %v835
        %v934 = vunpack.c.h.b16 %v835
        %v935 = vunpack.c.l.b16 %v836
        %v936 = vunpack.c.h.b16 %v836
        %v937 = vunpack.c.l.b16 %v837
        %v938 = vunpack.c.h.b16 %v837
        %v939 = vunpack.c.l.b16 %v838
        %v940 = vunpack.c.h.b16 %v838
        %v941 = vunpack.c.l.b16 %v839
        %v942 = vunpack.c.h.b16 %v839
        %v943 = vunpack.c.l.b16 %v840
        %v944 = vunpack.c.h.b16 %v840
        %v945 = vunpack.c.l.b16 %v841
        %v946 = vunpack.c.h.b16 %v841
        %v947 = vunpack.c.l.b16 %v842
        %v948 = vunpack.c.h.b16 %v842
        %v949 = vunpack.c.l.b16 %v843
        %v950 = vunpack.c.h.b16 %v843
        %v951 = vunpack.c.l.b16 %v844
        %v952 = vunpack.c.h.b16 %v844
        %v953 = vpack.c.b16 %v891, %v889
        %v954 = vpack.c.b16 %v892, %v890
        %v955 = vpack.c.b16 %v895, %v893
        %v956 = vpack.c.b16 %v896, %v894
        %v957 = vpack.c.b16 %v899, %v897
        %v958 = vpack.c.b16 %v900, %v898
        %v959 = vpack.c.b16 %v903, %v901
        %v960 = vpack.c.b16 %v904, %v902
        %v961 = vpack.c.b16 %v907, %v905
        %v962 = vpack.c.b16 %v908, %v906
        %v963 = vpack.c.b16 %v911, %v909
        %v964 = vpack.c.b16 %v912, %v910
        %v965 = vpack.c.b16 %v915, %v913
        %v966 = vpack.c.b16 %v916, %v914
        %v967 = vpack.c.b16 %v919, %v917
        %v968 = vpack.c.b16 %v920, %v918
        %v969 = vpack.c.b16 %v923, %v921
        %v970 = vpack.c.b16 %v924, %v922
        %v971 = vpack.c.b16 %v927, %v925
        %v972 = vpack.c.b16 %v928, %v926
        %v973 = vpack.c.b16 %v931, %v929
        %v974 = vpack.c.b16 %v932, %v930
        %v975 = vpack.c.b16 %v935, %v933
        %v976 = vpack.c.b16 %v936, %v934
        %v977 = vpack.c.b16 %v939, %v937
        %v978 = vpack.c.b16 %v940, %v938
        %v979 = vpack.c.b16 %v943, %v941
        %v980 = vpack.c.b16 %v944, %v942
        %v981 = vpack.c.b16 %v947, %v945
        %v982 = vpack.c.b16 %v948, %v946
        %v983 = vpack.c.b16 %v951, %v949
        %v984 = vpack.c.b16 %v952, %v950
        %1017 = vmatprep.subr.bf16.mxu0 %v954
        %1018 = vmatpush1.bf16.msra.mxu0 %v953
        %1019 = vmatprep.subr.bf16.mxu0 %v956
        %1020 = vmatpush1.bf16.msra.mxu0 %v955
        %1021 = vmatprep.subr.bf16.mxu0 %v958
        %1022 = vmatpush1.bf16.msra.mxu0 %v957
        %1023 = vmatprep.subr.bf16.mxu0 %v960
        %1024 = vmatpush1.bf16.msra.mxu0 %v959
        %1025 = vmatprep.subr.bf16.mxu0 %v962
        %1026 = vmatpush1.bf16.msra.mxu0 %v961
        %1027 = vmatprep.subr.bf16.mxu0 %v964
        %1028 = vmatpush1.bf16.msra.mxu0 %v963
        %1029 = vmatprep.subr.bf16.mxu0 %v966
        %1030 = vmatpush1.bf16.msra.mxu0 %v965
        %1031 = vmatprep.subr.bf16.mxu0 %v968
        %1032 = vmatpush1.bf16.msra.mxu0 %v967
        %1033 = vmatprep.subr.bf16.mxu0 %v970
        %1034 = vmatpush1.bf16.msra.mxu0 %v969
        %1035 = vmatprep.subr.bf16.mxu0 %v972
        %1036 = vmatpush1.bf16.msra.mxu0 %v971
        %1037 = vmatprep.subr.bf16.mxu0 %v974
        %1038 = vmatpush1.bf16.msra.mxu0 %v973
        %1039 = vmatprep.subr.bf16.mxu0 %v976
        %1040 = vmatpush1.bf16.msra.mxu0 %v975
        %1041 = vmatprep.subr.bf16.mxu0 %v978
        %1042 = vmatpush1.bf16.msra.mxu0 %v977
        %1043 = vmatprep.subr.bf16.mxu0 %v980
        %1044 = vmatpush1.bf16.msra.mxu0 %v979
        %1045 = vmatprep.subr.bf16.mxu0 %v982
        %1046 = vmatpush1.bf16.msra.mxu0 %v981
        %1047 = vmatprep.subr.bf16.mxu0 %v984
        %1048 = vmatpush1.bf16.msra.mxu0 %v983
        %1049 = vmatprep.mubr.bf16.mxu0 %v559
        %1050 = vmatmul.mubr.bf16.gmra.mrb[0].mxu0 %v558
        %v1051 = vpop.f32.mrb[0].mxu0
        %v1052 = vadd.f32 %v850, %v1051
        %v1053 = vpop.f32.mrb[0].mxu0
        %v1054 = vadd.f32 %v854, %v1053
        %v1055 = vpop.f32.mrb[0].mxu0
        %v1056 = vadd.f32 %v850, %v1055
        %v1057 = vpop.f32.mrb[0].mxu0
        %v1058 = vadd.f32 %v854, %v1057
        %1059 = vdwg.mxu0
        %v1060 = vld [vmem:[#allocation12] sm:$0xff]
        %v1061 = vld [vmem:[#allocation12 + $0x8] sm:$0xff]
        %v1062 = vld [vmem:[#allocation12 + $0x10] sm:$0xff]
        %v1063 = vld [vmem:[#allocation12 + $0x18] sm:$0xff]
        %v1064 = vld [vmem:[#allocation12 + $0x20] sm:$0xff]
        %v1065 = vld [vmem:[#allocation12 + $0x28] sm:$0xff]
        %v1066 = vld [vmem:[#allocation12 + $0x30] sm:$0xff]
        %v1067 = vld [vmem:[#allocation12 + $0x38] sm:$0xff]
        %v1068 = vld [vmem:[#allocation12 + $0x40] sm:$0xff]
        %v1069 = vld [vmem:[#allocation12 + $0x48] sm:$0xff]
        %v1070 = vld [vmem:[#allocation12 + $0x50] sm:$0xff]
        %v1071 = vld [vmem:[#allocation12 + $0x58] sm:$0xff]
        %v1072 = vld [vmem:[#allocation12 + $0x60] sm:$0xff]
        %v1073 = vld [vmem:[#allocation12 + $0x68] sm:$0xff]
        %v1074 = vld [vmem:[#allocation12 + $0x70] sm:$0xff]
        %v1075 = vld [vmem:[#allocation12 + $0x78] sm:$0xff]
        %v1076 = vld [vmem:[#allocation12 + $0x80] sm:$0xff]
        %v1077 = vld [vmem:[#allocation12 + $0x88] sm:$0xff]
        %v1078 = vld [vmem:[#allocation12 + $0x90] sm:$0xff]
        %v1079 = vld [vmem:[#allocation12 + $0x98] sm:$0xff]
        %v1080 = vld [vmem:[#allocation12 + $0xa0] sm:$0xff]
        %v1081 = vld [vmem:[#allocation12 + $0xa8] sm:$0xff]
        %v1082 = vld [vmem:[#allocation12 + $0xb0] sm:$0xff]
        %v1083 = vld [vmem:[#allocation12 + $0xb8] sm:$0xff]
        %v1084 = vld [vmem:[#allocation12 + $0xc0] sm:$0xff]
        %v1085 = vld [vmem:[#allocation12 + $0xc8] sm:$0xff]
        %v1086 = vld [vmem:[#allocation12 + $0xd0] sm:$0xff]
        %v1087 = vld [vmem:[#allocation12 + $0xd8] sm:$0xff]
        %v1088 = vld [vmem:[#allocation12 + $0xe0] sm:$0xff]
        %v1089 = vld [vmem:[#allocation12 + $0xe8] sm:$0xff]
        %v1090 = vld [vmem:[#allocation12 + $0xf0] sm:$0xff]
        %v1091 = vld [vmem:[#allocation12 + $0xf8] sm:$0xff]
        %v1092 = vld [vmem:[%s8] sm:$0x3]
        %v1094 = vlaneseq
        %v1095 = vshrl.u32 %v1094, 7
        %v1096 = vsub.s32 0, %v1095
        %v1097 = vrot.slane %v1092, %v1096
        %v1098 = vlaneseq
        %v1099 = vshrl.u32 %v1098, 7
        %v1100 = vsub.s32 1, %v1099
        %v1101 = vrot.slane %v1092, %v1100
        %v1136 = vunpack.c.l.b16 %v1060
        %v1137 = vunpack.c.h.b16 %v1060
        %v1138 = vunpack.c.l.b16 %v1061
        %v1139 = vunpack.c.h.b16 %v1061
        %v1140 = vunpack.c.l.b16 %v1062
        %v1141 = vunpack.c.h.b16 %v1062
        %v1142 = vunpack.c.l.b16 %v1063
        %v1143 = vunpack.c.h.b16 %v1063
        %v1144 = vunpack.c.l.b16 %v1064
        %v1145 = vunpack.c.h.b16 %v1064
        %v1146 = vunpack.c.l.b16 %v1065
        %v1147 = vunpack.c.h.b16 %v1065
        %v1148 = vunpack.c.l.b16 %v1066
        %v1149 = vunpack.c.h.b16 %v1066
        %v1150 = vunpack.c.l.b16 %v1067
        %v1151 = vunpack.c.h.b16 %v1067
        %v1152 = vunpack.c.l.b16 %v1068
        %v1153 = vunpack.c.h.b16 %v1068
        %v1154 = vunpack.c.l.b16 %v1069
        %v1155 = vunpack.c.h.b16 %v1069
        %v1156 = vunpack.c.l.b16 %v1070
        %v1157 = vunpack.c.h.b16 %v1070
        %v1158 = vunpack.c.l.b16 %v1071
        %v1159 = vunpack.c.h.b16 %v1071
        %v1160 = vunpack.c.l.b16 %v1072
        %v1161 = vunpack.c.h.b16 %v1072
        %v1162 = vunpack.c.l.b16 %v1073
        %v1163 = vunpack.c.h.b16 %v1073
        %v1164 = vunpack.c.l.b16 %v1074
        %v1165 = vunpack.c.h.b16 %v1074
        %v1166 = vunpack.c.l.b16 %v1075
        %v1167 = vunpack.c.h.b16 %v1075
        %v1168 = vunpack.c.l.b16 %v1076
        %v1169 = vunpack.c.h.b16 %v1076
        %v1170 = vunpack.c.l.b16 %v1077
        %v1171 = vunpack.c.h.b16 %v1077
        %v1172 = vunpack.c.l.b16 %v1078
        %v1173 = vunpack.c.h.b16 %v1078
        %v1174 = vunpack.c.l.b16 %v1079
        %v1175 = vunpack.c.h.b16 %v1079
        %v1176 = vunpack.c.l.b16 %v1080
        %v1177 = vunpack.c.h.b16 %v1080
        %v1178 = vunpack.c.l.b16 %v1081
        %v1179 = vunpack.c.h.b16 %v1081
        %v1180 = vunpack.c.l.b16 %v1082
        %v1181 = vunpack.c.h.b16 %v1082
        %v1182 = vunpack.c.l.b16 %v1083
        %v1183 = vunpack.c.h.b16 %v1083
        %v1184 = vunpack.c.l.b16 %v1084
        %v1185 = vunpack.c.h.b16 %v1084
        %v1186 = vunpack.c.l.b16 %v1085
        %v1187 = vunpack.c.h.b16 %v1085
        %v1188 = vunpack.c.l.b16 %v1086
        %v1189 = vunpack.c.h.b16 %v1086
        %v1190 = vunpack.c.l.b16 %v1087
        %v1191 = vunpack.c.h.b16 %v1087
        %v1192 = vunpack.c.l.b16 %v1088
        %v1193 = vunpack.c.h.b16 %v1088
        %v1194 = vunpack.c.l.b16 %v1089
        %v1195 = vunpack.c.h.b16 %v1089
        %v1196 = vunpack.c.l.b16 %v1090
        %v1197 = vunpack.c.h.b16 %v1090
        %v1198 = vunpack.c.l.b16 %v1091
        %v1199 = vunpack.c.h.b16 %v1091
        %v1200 = vpack.c.b16 %v1138, %v1136
        %v1201 = vpack.c.b16 %v1139, %v1137
        %v1202 = vpack.c.b16 %v1142, %v1140
        %v1203 = vpack.c.b16 %v1143, %v1141
        %v1204 = vpack.c.b16 %v1146, %v1144
        %v1205 = vpack.c.b16 %v1147, %v1145
        %v1206 = vpack.c.b16 %v1150, %v1148
        %v1207 = vpack.c.b16 %v1151, %v1149
        %v1208 = vpack.c.b16 %v1154, %v1152
        %v1209 = vpack.c.b16 %v1155, %v1153
        %v1210 = vpack.c.b16 %v1158, %v1156
        %v1211 = vpack.c.b16 %v1159, %v1157
        %v1212 = vpack.c.b16 %v1162, %v1160
        %v1213 = vpack.c.b16 %v1163, %v1161
        %v1214 = vpack.c.b16 %v1166, %v1164
        %v1215 = vpack.c.b16 %v1167, %v1165
        %v1216 = vpack.c.b16 %v1170, %v1168
        %v1217 = vpack.c.b16 %v1171, %v1169
        %v1218 = vpack.c.b16 %v1174, %v1172
        %v1219 = vpack.c.b16 %v1175, %v1173
        %v1220 = vpack.c.b16 %v1178, %v1176
        %v1221 = vpack.c.b16 %v1179, %v1177
        %v1222 = vpack.c.b16 %v1182, %v1180
        %v1223 = vpack.c.b16 %v1183, %v1181
        %v1224 = vpack.c.b16 %v1186, %v1184
        %v1225 = vpack.c.b16 %v1187, %v1185
        %v1226 = vpack.c.b16 %v1190, %v1188
        %v1227 = vpack.c.b16 %v1191, %v1189
        %v1228 = vpack.c.b16 %v1194, %v1192
        %v1229 = vpack.c.b16 %v1195, %v1193
        %v1230 = vpack.c.b16 %v1198, %v1196
        %v1231 = vpack.c.b16 %v1199, %v1197
        %1264 = vmatprep.subr.bf16.mxu0 %v1201
        %1265 = vmatpush1.bf16.msra.mxu0 %v1200
        %1266 = vmatprep.subr.bf16.mxu0 %v1203
        %1267 = vmatpush1.bf16.msra.mxu0 %v1202
        %1268 = vmatprep.subr.bf16.mxu0 %v1205
        %1269 = vmatpush1.bf16.msra.mxu0 %v1204
        %1270 = vmatprep.subr.bf16.mxu0 %v1207
        %1271 = vmatpush1.bf16.msra.mxu0 %v1206
        %1272 = vmatprep.subr.bf16.mxu0 %v1209
        %1273 = vmatpush1.bf16.msra.mxu0 %v1208
        %1274 = vmatprep.subr.bf16.mxu0 %v1211
        %1275 = vmatpush1.bf16.msra.mxu0 %v1210
        %1276 = vmatprep.subr.bf16.mxu0 %v1213
        %1277 = vmatpush1.bf16.msra.mxu0 %v1212
        %1278 = vmatprep.subr.bf16.mxu0 %v1215
        %1279 = vmatpush1.bf16.msra.mxu0 %v1214
        %1280 = vmatprep.subr.bf16.mxu0 %v1217
        %1281 = vmatpush1.bf16.msra.mxu0 %v1216
        %1282 = vmatprep.subr.bf16.mxu0 %v1219
        %1283 = vmatpush1.bf16.msra.mxu0 %v1218
        %1284 = vmatprep.subr.bf16.mxu0 %v1221
        %1285 = vmatpush1.bf16.msra.mxu0 %v1220
        %1286 = vmatprep.subr.bf16.mxu0 %v1223
        %1287 = vmatpush1.bf16.msra.mxu0 %v1222
        %1288 = vmatprep.subr.bf16.mxu0 %v1225
        %1289 = vmatpush1.bf16.msra.mxu0 %v1224
        %1290 = vmatprep.subr.bf16.mxu0 %v1227
        %1291 = vmatpush1.bf16.msra.mxu0 %v1226
        %1292 = vmatprep.subr.bf16.mxu0 %v1229
        %1293 = vmatpush1.bf16.msra.mxu0 %v1228
        %1294 = vmatprep.subr.bf16.mxu0 %v1231
        %1295 = vmatpush1.bf16.msra.mxu0 %v1230
        %1296 = vmatprep.mubr.bf16.mxu0 %v565
        %1297 = vmatmul.mubr.bf16.gmra.mrb[0].mxu0 %v564
        %v1298 = vpop.f32.mrb[0].mxu0
        %v1299 = vadd.f32 %v1097, %v1298
        %v1300 = vpop.f32.mrb[0].mxu0
        %v1301 = vadd.f32 %v1101, %v1300
        %v1302 = vpop.f32.mrb[0].mxu0
        %v1303 = vadd.f32 %v1097, %v1302
        %v1304 = vpop.f32.mrb[0].mxu0
        %v1305 = vadd.f32 %v1101, %v1304
        %1306 = vdwg.mxu0
        %v1307 = vpack.c.bf16 %v809, %v805
        %v1308 = vpack.c.bf16 %v1056, %v1052
        %v1309 = vpack.c.bf16 %v1303, %v1299
        %v1311 = vunpack.c.l.b16 %v1307
        %v1312 = vunpack.c.h.b16 %v1307
        %v1313 = vpack.c.b16 %v1311, %v1311
        %v1314 = vpack.c.b16 %v1312, %v1312
        %v1318 = vunpack.c.l.b16 %v1308
        %v1319 = vunpack.c.h.b16 %v1308
        %v1320 = vpack.c.b16 %v1318, %v1318
        %v1321 = vpack.c.b16 %v1319, %v1319
        %v1325 = vunpack.c.l.b16 %v1309
        %v1326 = vunpack.c.h.b16 %v1309
        %v1327 = vpack.c.b16 %v1325, %v1325
        %v1328 = vpack.c.b16 %v1326, %v1326
        %1329 = vmatprep.subr.bf16.mxu0 0
        %1330 = vmatpush1.bf16.xpose.msra.mxu0 %v1320
        %1331 = vmatprep.subr.bf16.mxu0 0
        %1332 = vmatpush1.bf16.xpose.msra.mxu0 0
        %1333 = vmatprep.subr.bf16.mxu0 0
        %1334 = vmatpush1.bf16.xpose.msra.mxu0 0
        %1335 = vmatprep.subr.bf16.mxu0 0
        %1336 = vmatpush1.bf16.xpose.msra.mxu0 0
        %1337 = vmatprep.subr.bf16.mxu0 0
        %1338 = vmatpush1.bf16.xpose.msra.mxu0 0
        %1339 = vmatprep.subr.bf16.mxu0 0
        %1340 = vmatpush1.bf16.xpose.msra.mxu0 0
        %1341 = vmatprep.subr.bf16.mxu0 0
        %1342 = vmatpush1.bf16.xpose.msra.mxu0 0
        %1343 = vmatprep.subr.bf16.mxu0 0
        %1344 = vmatpush1.bf16.xpose.msra.mxu0 0
        %1345 = vmatprep.subr.bf16.mxu0 0
        %1346 = vmatpush1.bf16.xpose.msra.mxu0 0
        %1347 = vmatprep.subr.bf16.mxu0 0
        %1348 = vmatpush1.bf16.xpose.msra.mxu0 0
        %1349 = vmatprep.subr.bf16.mxu0 0
        %1350 = vmatpush1.bf16.xpose.msra.mxu0 0
        %1351 = vmatprep.subr.bf16.mxu0 0
        %1352 = vmatpush1.bf16.xpose.msra.mxu0 0
        %1353 = vmatprep.subr.bf16.mxu0 0
        %1354 = vmatpush1.bf16.xpose.msra.mxu0 0
        %1355 = vmatprep.subr.bf16.mxu0 0
        %1356 = vmatpush1.bf16.xpose.msra.mxu0 0
        %1357 = vmatprep.subr.bf16.mxu0 0
        %1358 = vmatpush1.bf16.xpose.msra.mxu0 0
        %1359 = vmatprep.subr.bf16.mxu0 0
        %1360 = vmatpush1.bf16.xpose.msra.mxu0 0
        %1361 = vmatprep.mubr.bf16.mxu0 0
        %1362 = vmatmul.mubr.bf16.gmra.mrb[0].mxu0 %v1313
        %v1363 = vpop.f32.mrb[0].mxu0
        %v1364 = vadd.f32 0.0, %v1363
        %v1365 = vpop.f32.mrb[0].mxu0
        %v1366 = vpop.f32.mrb[0].mxu0
        %v1367 = vpop.f32.mrb[0].mxu0
        %1368 = vdwg.mxu0
        %1369 = vmatprep.subr.bf16.mxu0 0
        %1370 = vmatpush1.bf16.xpose.msra.mxu0 %v1321
        %1371 = vmatprep.subr.bf16.mxu0 0
        %1372 = vmatpush1.bf16.xpose.msra.mxu0 0
        %1373 = vmatprep.subr.bf16.mxu0 0
        %1374 = vmatpush1.bf16.xpose.msra.mxu0 0
        %1375 = vmatprep.subr.bf16.mxu0 0
        %1376 = vmatpush1.bf16.xpose.msra.mxu0 0
        %1377 = vmatprep.subr.bf16.mxu0 0
        %1378 = vmatpush1.bf16.xpose.msra.mxu0 0
        %1379 = vmatprep.subr.bf16.mxu0 0
        %1380 = vmatpush1.bf16.xpose.msra.mxu0 0
        %1381 = vmatprep.subr.bf16.mxu0 0
        %1382 = vmatpush1.bf16.xpose.msra.mxu0 0
        %1383 = vmatprep.subr.bf16.mxu0 0
        %1384 = vmatpush1.bf16.xpose.msra.mxu0 0
        %1385 = vmatprep.subr.bf16.mxu0 0
        %1386 = vmatpush1.bf16.xpose.msra.mxu0 0
        %1387 = vmatprep.subr.bf16.mxu0 0
        %1388 = vmatpush1.bf16.xpose.msra.mxu0 0
        %1389 = vmatprep.subr.bf16.mxu0 0
        %1390 = vmatpush1.bf16.xpose.msra.mxu0 0
        %1391 = vmatprep.subr.bf16.mxu0 0
        %1392 = vmatpush1.bf16.xpose.msra.mxu0 0
        %1393 = vmatprep.subr.bf16.mxu0 0
        %1394 = vmatpush1.bf16.xpose.msra.mxu0 0
        %1395 = vmatprep.subr.bf16.mxu0 0
        %1396 = vmatpush1.bf16.xpose.msra.mxu0 0
        %1397 = vmatprep.subr.bf16.mxu0 0
        %1398 = vmatpush1.bf16.xpose.msra.mxu0 0
        %1399 = vmatprep.subr.bf16.mxu0 0
        %1400 = vmatpush1.bf16.xpose.msra.mxu0 0
        %1401 = vmatprep.mubr.bf16.mxu0 0
        %1402 = vmatmul.mubr.bf16.gmra.mrb[0].mxu0 %v1314
        %v1403 = vpop.f32.mrb[0].mxu0
        %v1404 = vadd.f32 0.0, %v1403
        %v1405 = vpop.f32.mrb[0].mxu0
        %v1406 = vpop.f32.mrb[0].mxu0
        %v1407 = vpop.f32.mrb[0].mxu0
        %1408 = vdwg.mxu0
        %vm1409 = vcmask 64512
        %v1410 = vsel %vm1409, %v1364, -inf
        %1411 = vmax.xlane.f32.xlu0 %v1410
        %v1412 = vpop.xlane.xlu0 %1411
        %v1413 = vsel %vm1409, %v1404, -inf
        %1414 = vmax.xlane.f32.xlu0 %v1413
        %v1415 = vpop.xlane.xlu0 %1414
        %v1416 = vsub.f32 %v1364, %v1412
        %v1417 = vsub.f32 %v1404, %v1415
        %v1418 = vmul.f32 %v1416, 1.442695
        %v1419 = vpow.pop %v1418
        %v1420 = vmul.f32 %v1417, 1.442695
        %v1421 = vpow.pop %v1420
        %v1422 = vsel %vm1409, %v1419, 0.0
        %1423 = vadd.xlane.f32.xlu0 %v1422
        %v1424 = vpop.xlane.xlu0 %1423
        %v1425 = vsel %vm1409, %v1421, 0.0
        %1426 = vadd.xlane.f32.xlu0 %v1425
        %v1427 = vpop.xlane.xlu0 %1426
        %v1428 = vrcp.pop %v1424
        %v1429 = vrcp.pop %v1427
        %v1430 = vmul.f32 %v1419, %v1428
        %v1431 = vmul.f32 %v1421, %v1429
        %v1432 = vpack.c.bf16 %v1430, %v1430
        %v1433 = vpack.c.bf16 %v1431, %v1431
        %v1435 = vsel %vm1409, %v1432, 0
        %vm1437 = vcmask 1043456
        %v1439 = vsel %vm1437, %v1327, 0
        %1441 = vmatprep.subr.bf16.mxu0 0
        %1442 = vmatpush1.bf16.msra.mxu0 %v1439
        %1443 = vmatprep.subr.bf16.mxu0 0
        %1444 = vmatpush1.bf16.msra.mxu0 0
        %1445 = vmatprep.subr.bf16.mxu0 0
        %1446 = vmatpush1.bf16.msra.mxu0 0
        %1447 = vmatprep.subr.bf16.mxu0 0
        %1448 = vmatpush1.bf16.msra.mxu0 0
        %1449 = vmatprep.subr.bf16.mxu0 0
        %1450 = vmatpush1.bf16.msra.mxu0 0
        %1451 = vmatprep.subr.bf16.mxu0 0
        %1452 = vmatpush1.bf16.msra.mxu0 0
        %1453 = vmatprep.subr.bf16.mxu0 0
        %1454 = vmatpush1.bf16.msra.mxu0 0
        %1455 = vmatprep.subr.bf16.mxu0 0
        %1456 = vmatpush1.bf16.msra.mxu0 0
        %1457 = vmatprep.subr.bf16.mxu0 0
        %1458 = vmatpush1.bf16.msra.mxu0 0
        %1459 = vmatprep.subr.bf16.mxu0 0
        %1460 = vmatpush1.bf16.msra.mxu0 0
        %1461 = vmatprep.subr.bf16.mxu0 0
        %1462 = vmatpush1.bf16.msra.mxu0 0
        %1463 = vmatprep.subr.bf16.mxu0 0
        %1464 = vmatpush1.bf16.msra.mxu0 0
        %1465 = vmatprep.subr.bf16.mxu0 0
        %1466 = vmatpush1.bf16.msra.mxu0 0
        %1467 = vmatprep.subr.bf16.mxu0 0
        %1468 = vmatpush1.bf16.msra.mxu0 0
        %1469 = vmatprep.subr.bf16.mxu0 0
        %1470 = vmatpush1.bf16.msra.mxu0 0
        %1471 = vmatprep.subr.bf16.mxu0 0
        %1472 = vmatpush1.bf16.msra.mxu0 0
        %1473 = vmatprep.mubr.bf16.mxu0 0
        %1474 = vmatmul.mubr.bf16.gmra.mrb[0].mxu0 %v1435
        %v1475 = vpop.f32.mrb[0].mxu0
        %v1476 = vadd.f32 0.0, %v1475
        %v1477 = vpop.f32.mrb[0].mxu0
        %v1478 = vpop.f32.mrb[0].mxu0
        %v1479 = vpop.f32.mrb[0].mxu0
        %1480 = vdwg.mxu0
        %v1482 = vsel %vm1409, %v1433, 0
        %v1485 = vsel %vm1437, %v1328, 0
        %1487 = vmatprep.subr.bf16.mxu0 0
        %1488 = vmatpush1.bf16.msra.mxu0 %v1485
        %1489 = vmatprep.subr.bf16.mxu0 0
        %1490 = vmatpush1.bf16.msra.mxu0 0
        %1491 = vmatprep.subr.bf16.mxu0 0
        %1492 = vmatpush1.bf16.msra.mxu0 0
        %1493 = vmatprep.subr.bf16.mxu0 0
        %1494 = vmatpush1.bf16.msra.mxu0 0
        %1495 = vmatprep.subr.bf16.mxu0 0
        %1496 = vmatpush1.bf16.msra.mxu0 0
        %1497 = vmatprep.subr.bf16.mxu0 0
        %1498 = vmatpush1.bf16.msra.mxu0 0
        %1499 = vmatprep.subr.bf16.mxu0 0
        %1500 = vmatpush1.bf16.msra.mxu0 0
        %1501 = vmatprep.subr.bf16.mxu0 0
        %1502 = vmatpush1.bf16.msra.mxu0 0
        %1503 = vmatprep.subr.bf16.mxu0 0
        %1504 = vmatpush1.bf16.msra.mxu0 0
        %1505 = vmatprep.subr.bf16.mxu0 0
        %1506 = vmatpush1.bf16.msra.mxu0 0
        %1507 = vmatprep.subr.bf16.mxu0 0
        %1508 = vmatpush1.bf16.msra.mxu0 0
        %1509 = vmatprep.subr.bf16.mxu0 0
        %1510 = vmatpush1.bf16.msra.mxu0 0
        %1511 = vmatprep.subr.bf16.mxu0 0
        %1512 = vmatpush1.bf16.msra.mxu0 0
        %1513 = vmatprep.subr.bf16.mxu0 0
        %1514 = vmatpush1.bf16.msra.mxu0 0
        %1515 = vmatprep.subr.bf16.mxu0 0
        %1516 = vmatpush1.bf16.msra.mxu0 0
        %1517 = vmatprep.subr.bf16.mxu0 0
        %1518 = vmatpush1.bf16.msra.mxu0 0
        %1519 = vmatprep.mubr.bf16.mxu0 0
        %1520 = vmatmul.mubr.bf16.gmra.mrb[0].mxu0 %v1482
        %v1521 = vpop.f32.mrb[0].mxu0
        %v1522 = vadd.f32 0.0, %v1521
        %v1523 = vpop.f32.mrb[0].mxu0
        %v1524 = vpop.f32.mrb[0].mxu0
        %v1525 = vpop.f32.mrb[0].mxu0
        %1526 = vdwg.mxu0
        %v1527 = vpack.c.bf16 %v1522, %v1476
        %1528 = vst [vmem:[#allocation2] sm:$0xff] %v1527
        %v1529 = vpack.c.bf16 %v811, %v807
        %v1530 = vpack.c.bf16 %v1058, %v1054
        %v1531 = vpack.c.bf16 %v1305, %v1301
        %v1533 = vunpack.c.l.b16 %v1529
        %v1534 = vunpack.c.h.b16 %v1529
        %v1535 = vpack.c.b16 %v1533, %v1533
        %v1536 = vpack.c.b16 %v1534, %v1534
        %v1540 = vunpack.c.l.b16 %v1530
        %v1541 = vunpack.c.h.b16 %v1530
        %v1542 = vpack.c.b16 %v1540, %v1540
        %v1543 = vpack.c.b16 %v1541, %v1541
        %v1547 = vunpack.c.l.b16 %v1531
        %v1548 = vunpack.c.h.b16 %v1531
        %v1549 = vpack.c.b16 %v1547, %v1547
        %v1550 = vpack.c.b16 %v1548, %v1548
        %1551 = vmatprep.subr.bf16.mxu0 0
        %1552 = vmatpush1.bf16.xpose.msra.mxu0 %v1542
        %1553 = vmatprep.subr.bf16.mxu0 0
        %1554 = vmatpush1.bf16.xpose.msra.mxu0 0
        %1555 = vmatprep.subr.bf16.mxu0 0
        %1556 = vmatpush1.bf16.xpose.msra.mxu0 0
        %1557 = vmatprep.subr.bf16.mxu0 0
        %1558 = vmatpush1.bf16.xpose.msra.mxu0 0
        %1559 = vmatprep.subr.bf16.mxu0 0
        %1560 = vmatpush1.bf16.xpose.msra.mxu0 0
        %1561 = vmatprep.subr.bf16.mxu0 0
        %1562 = vmatpush1.bf16.xpose.msra.mxu0 0
        %1563 = vmatprep.subr.bf16.mxu0 0
        %1564 = vmatpush1.bf16.xpose.msra.mxu0 0
        %1565 = vmatprep.subr.bf16.mxu0 0
        %1566 = vmatpush1.bf16.xpose.msra.mxu0 0
        %1567 = vmatprep.subr.bf16.mxu0 0
        %1568 = vmatpush1.bf16.xpose.msra.mxu0 0
        %1569 = vmatprep.subr.bf16.mxu0 0
        %1570 = vmatpush1.bf16.xpose.msra.mxu0 0
        %1571 = vmatprep.subr.bf16.mxu0 0
        %1572 = vmatpush1.bf16.xpose.msra.mxu0 0
        %1573 = vmatprep.subr.bf16.mxu0 0
        %1574 = vmatpush1.bf16.xpose.msra.mxu0 0
        %1575 = vmatprep.subr.bf16.mxu0 0
        %1576 = vmatpush1.bf16.xpose.msra.mxu0 0
        %1577 = vmatprep.subr.bf16.mxu0 0
        %1578 = vmatpush1.bf16.xpose.msra.mxu0 0
        %1579 = vmatprep.subr.bf16.mxu0 0
        %1580 = vmatpush1.bf16.xpose.msra.mxu0 0
        %1581 = vmatprep.subr.bf16.mxu0 0
        %1582 = vmatpush1.bf16.xpose.msra.mxu0 0
        %1583 = vmatprep.mubr.bf16.mxu0 0
        %1584 = vmatmul.mubr.bf16.gmra.mrb[0].mxu0 %v1535
        %v1585 = vpop.f32.mrb[0].mxu0
        %v1586 = vadd.f32 0.0, %v1585
        %v1587 = vpop.f32.mrb[0].mxu0
        %v1588 = vpop.f32.mrb[0].mxu0
        %v1589 = vpop.f32.mrb[0].mxu0
        %1590 = vdwg.mxu0
        %1591 = vmatprep.subr.bf16.mxu0 0
        %1592 = vmatpush1.bf16.xpose.msra.mxu0 %v1543
        %1593 = vmatprep.subr.bf16.mxu0 0
        %1594 = vmatpush1.bf16.xpose.msra.mxu0 0
        %1595 = vmatprep.subr.bf16.mxu0 0
        %1596 = vmatpush1.bf16.xpose.msra.mxu0 0
        %1597 = vmatprep.subr.bf16.mxu0 0
        %1598 = vmatpush1.bf16.xpose.msra.mxu0 0
        %1599 = vmatprep.subr.bf16.mxu0 0
        %1600 = vmatpush1.bf16.xpose.msra.mxu0 0
        %1601 = vmatprep.subr.bf16.mxu0 0
        %1602 = vmatpush1.bf16.xpose.msra.mxu0 0
        %1603 = vmatprep.subr.bf16.mxu0 0
        %1604 = vmatpush1.bf16.xpose.msra.mxu0 0
        %1605 = vmatprep.subr.bf16.mxu0 0
        %1606 = vmatpush1.bf16.xpose.msra.mxu0 0
        %1607 = vmatprep.subr.bf16.mxu0 0
        %1608 = vmatpush1.bf16.xpose.msra.mxu0 0
        %1609 = vmatprep.subr.bf16.mxu0 0
        %1610 = vmatpush1.bf16.xpose.msra.mxu0 0
        %1611 = vmatprep.subr.bf16.mxu0 0
        %1612 = vmatpush1.bf16.xpose.msra.mxu0 0
        %1613 = vmatprep.subr.bf16.mxu0 0
        %1614 = vmatpush1.bf16.xpose.msra.mxu0 0
        %1615 = vmatprep.subr.bf16.mxu0 0
        %1616 = vmatpush1.bf16.xpose.msra.mxu0 0
        %1617 = vmatprep.subr.bf16.mxu0 0
        %1618 = vmatpush1.bf16.xpose.msra.mxu0 0
        %1619 = vmatprep.subr.bf16.mxu0 0
        %1620 = vmatpush1.bf16.xpose.msra.mxu0 0
        %1621 = vmatprep.subr.bf16.mxu0 0
        %1622 = vmatpush1.bf16.xpose.msra.mxu0 0
        %1623 = vmatprep.mubr.bf16.mxu0 0
        %1624 = vmatmul.mubr.bf16.gmra.mrb[0].mxu0 %v1536
        %v1625 = vpop.f32.mrb[0].mxu0
        %v1626 = vadd.f32 0.0, %v1625
        %v1627 = vpop.f32.mrb[0].mxu0
        %v1628 = vpop.f32.mrb[0].mxu0
        %v1629 = vpop.f32.mrb[0].mxu0
        %1630 = vdwg.mxu0
        %v1631 = vsel %vm1409, %v1586, -inf
        %1632 = vmax.xlane.f32.xlu0 %v1631
        %v1633 = vpop.xlane.xlu0 %1632
        %v1634 = vsel %vm1409, %v1626, -inf
        %1635 = vmax.xlane.f32.xlu0 %v1634
        %v1636 = vpop.xlane.xlu0 %1635
        %v1637 = vsub.f32 %v1586, %v1633
        %v1638 = vsub.f32 %v1626, %v1636
        %v1639 = vmul.f32 %v1637, 1.442695
        %v1640 = vpow.pop %v1639
        %v1641 = vmul.f32 %v1638, 1.442695
        %v1642 = vpow.pop %v1641
        %v1643 = vsel %vm1409, %v1640, 0.0
        %1644 = vadd.xlane.f32.xlu0 %v1643
        %v1645 = vpop.xlane.xlu0 %1644
        %v1646 = vsel %vm1409, %v1642, 0.0
        %1647 = vadd.xlane.f32.xlu0 %v1646
        %v1648 = vpop.xlane.xlu0 %1647
        %v1649 = vrcp.pop %v1645
        %v1650 = vrcp.pop %v1648
        %v1651 = vmul.f32 %v1640, %v1649
        %v1652 = vmul.f32 %v1642, %v1650
        %v1653 = vpack.c.bf16 %v1651, %v1651
        %v1654 = vpack.c.bf16 %v1652, %v1652
        %v1656 = vsel %vm1409, %v1653, 0
        %v1659 = vsel %vm1437, %v1549, 0
        %1661 = vmatprep.subr.bf16.mxu0 0
        %1662 = vmatpush1.bf16.msra.mxu0 %v1659
        %1663 = vmatprep.subr.bf16.mxu0 0
        %1664 = vmatpush1.bf16.msra.mxu0 0
        %1665 = vmatprep.subr.bf16.mxu0 0
        %1666 = vmatpush1.bf16.msra.mxu0 0
        %1667 = vmatprep.subr.bf16.mxu0 0
        %1668 = vmatpush1.bf16.msra.mxu0 0
        %1669 = vmatprep.subr.bf16.mxu0 0
        %1670 = vmatpush1.bf16.msra.mxu0 0
        %1671 = vmatprep.subr.bf16.mxu0 0
        %1672 = vmatpush1.bf16.msra.mxu0 0
        %1673 = vmatprep.subr.bf16.mxu0 0
        %1674 = vmatpush1.bf16.msra.mxu0 0
        %1675 = vmatprep.subr.bf16.mxu0 0
        %1676 = vmatpush1.bf16.msra.mxu0 0
        %1677 = vmatprep.subr.bf16.mxu0 0
        %1678 = vmatpush1.bf16.msra.mxu0 0
        %1679 = vmatprep.subr.bf16.mxu0 0
        %1680 = vmatpush1.bf16.msra.mxu0 0
        %1681 = vmatprep.subr.bf16.mxu0 0
        %1682 = vmatpush1.bf16.msra.mxu0 0
        %1683 = vmatprep.subr.bf16.mxu0 0
        %1684 = vmatpush1.bf16.msra.mxu0 0
        %1685 = vmatprep.subr.bf16.mxu0 0
        %1686 = vmatpush1.bf16.msra.mxu0 0
        %1687 = vmatprep.subr.bf16.mxu0 0
        %1688 = vmatpush1.bf16.msra.mxu0 0
        %1689 = vmatprep.subr.bf16.mxu0 0
        %1690 = vmatpush1.bf16.msra.mxu0 0
        %1691 = vmatprep.subr.bf16.mxu0 0
        %1692 = vmatpush1.bf16.msra.mxu0 0
        %1693 = vmatprep.mubr.bf16.mxu0 0
        %1694 = vmatmul.mubr.bf16.gmra.mrb[0].mxu0 %v1656
        %v1695 = vpop.f32.mrb[0].mxu0
        %v1696 = vadd.f32 0.0, %v1695
        %v1697 = vpop.f32.mrb[0].mxu0
        %v1698 = vpop.f32.mrb[0].mxu0
        %v1699 = vpop.f32.mrb[0].mxu0
        %1700 = vdwg.mxu0
        %v1702 = vsel %vm1409, %v1654, 0
        %v1705 = vsel %vm1437, %v1550, 0
        %1707 = vmatprep.subr.bf16.mxu0 0
        %1708 = vmatpush1.bf16.msra.mxu0 %v1705
        %1709 = vmatprep.subr.bf16.mxu0 0
        %1710 = vmatpush1.bf16.msra.mxu0 0
        %1711 = vmatprep.subr.bf16.mxu0 0
        %1712 = vmatpush1.bf16.msra.mxu0 0
        %1713 = vmatprep.subr.bf16.mxu0 0
        %1714 = vmatpush1.bf16.msra.mxu0 0
        %1715 = vmatprep.subr.bf16.mxu0 0
        %1716 = vmatpush1.bf16.msra.mxu0 0
        %1717 = vmatprep.subr.bf16.mxu0 0
        %1718 = vmatpush1.bf16.msra.mxu0 0
        %1719 = vmatprep.subr.bf16.mxu0 0
        %1720 = vmatpush1.bf16.msra.mxu0 0
        %1721 = vmatprep.subr.bf16.mxu0 0
        %1722 = vmatpush1.bf16.msra.mxu0 0
        %1723 = vmatprep.subr.bf16.mxu0 0
        %1724 = vmatpush1.bf16.msra.mxu0 0
        %1725 = vmatprep.subr.bf16.mxu0 0
        %1726 = vmatpush1.bf16.msra.mxu0 0
        %1727 = vmatprep.subr.bf16.mxu0 0
        %1728 = vmatpush1.bf16.msra.mxu0 0
        %1729 = vmatprep.subr.bf16.mxu0 0
        %1730 = vmatpush1.bf16.msra.mxu0 0
        %1731 = vmatprep.subr.bf16.mxu0 0
        %1732 = vmatpush1.bf16.msra.mxu0 0
        %1733 = vmatprep.subr.bf16.mxu0 0
        %1734 = vmatpush1.bf16.msra.mxu0 0
        %1735 = vmatprep.subr.bf16.mxu0 0
        %1736 = vmatpush1.bf16.msra.mxu0 0
        %1737 = vmatprep.subr.bf16.mxu0 0
        %1738 = vmatpush1.bf16.msra.mxu0 0
        %1739 = vmatprep.mubr.bf16.mxu0 0
        %1740 = vmatmul.mubr.bf16.gmra.mrb[0].mxu0 %v1702
        %v1741 = vpop.f32.mrb[0].mxu0
        %v1742 = vadd.f32 0.0, %v1741
        %v1743 = vpop.f32.mrb[0].mxu0
        %v1744 = vpop.f32.mrb[0].mxu0
        %v1745 = vpop.f32.mrb[0].mxu0
        %1746 = vdwg.mxu0
        %v1747 = vpack.c.bf16 %v1742, %v1696
        %1748 = vst [vmem:[#allocation2 + $0x8] sm:$0xff] %v1747
        %v1749 = vld [vmem:[#allocation2] sm:$0xff]
        %v1750 = vld [vmem:[#allocation2 + $0x8] sm:$0xff]
        %v1751 = vld [vmem:[#allocation14] sm:$0xff]
        %v1752 = vld [vmem:[#allocation14 + $0x8] sm:$0xff]
        %v1753 = vld [vmem:[#allocation14 + $0x10] sm:$0xff]
        %v1754 = vld [vmem:[#allocation14 + $0x18] sm:$0xff]
        %v1755 = vld [vmem:[#allocation14 + $0x20] sm:$0xff]
        %v1756 = vld [vmem:[#allocation14 + $0x28] sm:$0xff]
        %v1757 = vld [vmem:[#allocation14 + $0x30] sm:$0xff]
        %v1758 = vld [vmem:[#allocation14 + $0x38] sm:$0xff]
        %v1759 = vld [vmem:[#allocation14 + $0x40] sm:$0xff]
        %v1760 = vld [vmem:[#allocation14 + $0x48] sm:$0xff]
        %v1761 = vld [vmem:[#allocation14 + $0x50] sm:$0xff]
        %v1762 = vld [vmem:[#allocation14 + $0x58] sm:$0xff]
        %v1763 = vld [vmem:[#allocation14 + $0x60] sm:$0xff]
        %v1764 = vld [vmem:[#allocation14 + $0x68] sm:$0xff]
        %v1765 = vld [vmem:[#allocation14 + $0x70] sm:$0xff]
        %v1766 = vld [vmem:[#allocation14 + $0x78] sm:$0xff]
        %v1767 = vld [vmem:[#allocation14 + $0x80] sm:$0xff]
        %v1768 = vld [vmem:[#allocation14 + $0x88] sm:$0xff]
        %v1769 = vld [vmem:[#allocation14 + $0x90] sm:$0xff]
        %v1770 = vld [vmem:[#allocation14 + $0x98] sm:$0xff]
        %v1771 = vld [vmem:[#allocation14 + $0xa0] sm:$0xff]
        %v1772 = vld [vmem:[#allocation14 + $0xa8] sm:$0xff]
        %v1773 = vld [vmem:[#allocation14 + $0xb0] sm:$0xff]
        %v1774 = vld [vmem:[#allocation14 + $0xb8] sm:$0xff]
        %v1775 = vld [vmem:[#allocation14 + $0xc0] sm:$0xff]
        %v1776 = vld [vmem:[#allocation14 + $0xc8] sm:$0xff]
        %v1777 = vld [vmem:[#allocation14 + $0xd0] sm:$0xff]
        %v1778 = vld [vmem:[#allocation14 + $0xd8] sm:$0xff]
        %v1779 = vld [vmem:[#allocation14 + $0xe0] sm:$0xff]
        %v1780 = vld [vmem:[#allocation14 + $0xe8] sm:$0xff]
        %v1781 = vld [vmem:[#allocation14 + $0xf0] sm:$0xff]
        %v1782 = vld [vmem:[#allocation14 + $0xf8] sm:$0xff]
        %v1783 = vld [vmem:[%s10] sm:$0x3]
        %v1785 = vlaneseq
        %v1786 = vshrl.u32 %v1785, 7
        %v1787 = vsub.s32 0, %v1786
        %v1788 = vrot.slane %v1783, %v1787
        %v1789 = vlaneseq
        %v1790 = vshrl.u32 %v1789, 7
        %v1791 = vsub.s32 1, %v1790
        %v1792 = vrot.slane %v1783, %v1791
        %v1827 = vunpack.c.l.b16 %v1751
        %v1828 = vunpack.c.h.b16 %v1751
        %v1829 = vunpack.c.l.b16 %v1752
        %v1830 = vunpack.c.h.b16 %v1752
        %v1831 = vunpack.c.l.b16 %v1753
        %v1832 = vunpack.c.h.b16 %v1753
        %v1833 = vunpack.c.l.b16 %v1754
        %v1834 = vunpack.c.h.b16 %v1754
        %v1835 = vunpack.c.l.b16 %v1755
        %v1836 = vunpack.c.h.b16 %v1755
        %v1837 = vunpack.c.l.b16 %v1756
        %v1838 = vunpack.c.h.b16 %v1756
        %v1839 = vunpack.c.l.b16 %v1757
        %v1840 = vunpack.c.h.b16 %v1757
        %v1841 = vunpack.c.l.b16 %v1758
        %v1842 = vunpack.c.h.b16 %v1758
        %v1843 = vunpack.c.l.b16 %v1759
        %v1844 = vunpack.c.h.b16 %v1759
        %v1845 = vunpack.c.l.b16 %v1760
        %v1846 = vunpack.c.h.b16 %v1760
        %v1847 = vunpack.c.l.b16 %v1761
        %v1848 = vunpack.c.h.b16 %v1761
        %v1849 = vunpack.c.l.b16 %v1762
        %v1850 = vunpack.c.h.b16 %v1762
        %v1851 = vunpack.c.l.b16 %v1763
        %v1852 = vunpack.c.h.b16 %v1763
        %v1853 = vunpack.c.l.b16 %v1764
        %v1854 = vunpack.c.h.b16 %v1764
        %v1855 = vunpack.c.l.b16 %v1765
        %v1856 = vunpack.c.h.b16 %v1765
        %v1857 = vunpack.c.l.b16 %v1766
        %v1858 = vunpack.c.h.b16 %v1766
        %v1859 = vunpack.c.l.b16 %v1767
        %v1860 = vunpack.c.h.b16 %v1767
        %v1861 = vunpack.c.l.b16 %v1768
        %v1862 = vunpack.c.h.b16 %v1768
        %v1863 = vunpack.c.l.b16 %v1769
        %v1864 = vunpack.c.h.b16 %v1769
        %v1865 = vunpack.c.l.b16 %v1770
        %v1866 = vunpack.c.h.b16 %v1770
        %v1867 = vunpack.c.l.b16 %v1771
        %v1868 = vunpack.c.h.b16 %v1771
        %v1869 = vunpack.c.l.b16 %v1772
        %v1870 = vunpack.c.h.b16 %v1772
        %v1871 = vunpack.c.l.b16 %v1773
        %v1872 = vunpack.c.h.b16 %v1773
        %v1873 = vunpack.c.l.b16 %v1774
        %v1874 = vunpack.c.h.b16 %v1774
        %v1875 = vunpack.c.l.b16 %v1775
        %v1876 = vunpack.c.h.b16 %v1775
        %v1877 = vunpack.c.l.b16 %v1776
        %v1878 = vunpack.c.h.b16 %v1776
        %v1879 = vunpack.c.l.b16 %v1777
        %v1880 = vunpack.c.h.b16 %v1777
        %v1881 = vunpack.c.l.b16 %v1778
        %v1882 = vunpack.c.h.b16 %v1778
        %v1883 = vunpack.c.l.b16 %v1779
        %v1884 = vunpack.c.h.b16 %v1779
        %v1885 = vunpack.c.l.b16 %v1780
        %v1886 = vunpack.c.h.b16 %v1780
        %v1887 = vunpack.c.l.b16 %v1781
        %v1888 = vunpack.c.h.b16 %v1781
        %v1889 = vunpack.c.l.b16 %v1782
        %v1890 = vunpack.c.h.b16 %v1782
        %v1891 = vpack.c.b16 %v1829, %v1827
        %v1892 = vpack.c.b16 %v1830, %v1828
        %v1893 = vpack.c.b16 %v1833, %v1831
        %v1894 = vpack.c.b16 %v1834, %v1832
        %v1895 = vpack.c.b16 %v1837, %v1835
        %v1896 = vpack.c.b16 %v1838, %v1836
        %v1897 = vpack.c.b16 %v1841, %v1839
        %v1898 = vpack.c.b16 %v1842, %v1840
        %v1899 = vpack.c.b16 %v1845, %v1843
        %v1900 = vpack.c.b16 %v1846, %v1844
        %v1901 = vpack.c.b16 %v1849, %v1847
        %v1902 = vpack.c.b16 %v1850, %v1848
        %v1903 = vpack.c.b16 %v1853, %v1851
        %v1904 = vpack.c.b16 %v1854, %v1852
        %v1905 = vpack.c.b16 %v1857, %v1855
        %v1906 = vpack.c.b16 %v1858, %v1856
        %v1907 = vpack.c.b16 %v1861, %v1859
        %v1908 = vpack.c.b16 %v1862, %v1860
        %v1909 = vpack.c.b16 %v1865, %v1863
        %v1910 = vpack.c.b16 %v1866, %v1864
        %v1911 = vpack.c.b16 %v1869, %v1867
        %v1912 = vpack.c.b16 %v1870, %v1868
        %v1913 = vpack.c.b16 %v1873, %v1871
        %v1914 = vpack.c.b16 %v1874, %v1872
        %v1915 = vpack.c.b16 %v1877, %v1875
        %v1916 = vpack.c.b16 %v1878, %v1876
        %v1917 = vpack.c.b16 %v1881, %v1879
        %v1918 = vpack.c.b16 %v1882, %v1880
        %v1919 = vpack.c.b16 %v1885, %v1883
        %v1920 = vpack.c.b16 %v1886, %v1884
        %v1921 = vpack.c.b16 %v1889, %v1887
        %v1922 = vpack.c.b16 %v1890, %v1888
        %1955 = vmatprep.subr.bf16.mxu0 %v1892
        %1956 = vmatpush1.bf16.msra.mxu0 %v1891
        %1957 = vmatprep.subr.bf16.mxu0 %v1894
        %1958 = vmatpush1.bf16.msra.mxu0 %v1893
        %1959 = vmatprep.subr.bf16.mxu0 %v1896
        %1960 = vmatpush1.bf16.msra.mxu0 %v1895
        %1961 = vmatprep.subr.bf16.mxu0 %v1898
        %1962 = vmatpush1.bf16.msra.mxu0 %v1897
        %1963 = vmatprep.subr.bf16.mxu0 %v1900
        %1964 = vmatpush1.bf16.msra.mxu0 %v1899
        %1965 = vmatprep.subr.bf16.mxu0 %v1902
        %1966 = vmatpush1.bf16.msra.mxu0 %v1901
        %1967 = vmatprep.subr.bf16.mxu0 %v1904
        %1968 = vmatpush1.bf16.msra.mxu0 %v1903
        %1969 = vmatprep.subr.bf16.mxu0 %v1906
        %1970 = vmatpush1.bf16.msra.mxu0 %v1905
        %1971 = vmatprep.subr.bf16.mxu0 %v1908
        %1972 = vmatpush1.bf16.msra.mxu0 %v1907
        %1973 = vmatprep.subr.bf16.mxu0 %v1910
        %1974 = vmatpush1.bf16.msra.mxu0 %v1909
        %1975 = vmatprep.subr.bf16.mxu0 %v1912
        %1976 = vmatpush1.bf16.msra.mxu0 %v1911
        %1977 = vmatprep.subr.bf16.mxu0 %v1914
        %1978 = vmatpush1.bf16.msra.mxu0 %v1913
        %1979 = vmatprep.subr.bf16.mxu0 %v1916
        %1980 = vmatpush1.bf16.msra.mxu0 %v1915
        %1981 = vmatprep.subr.bf16.mxu0 %v1918
        %1982 = vmatpush1.bf16.msra.mxu0 %v1917
        %1983 = vmatprep.subr.bf16.mxu0 %v1920
        %1984 = vmatpush1.bf16.msra.mxu0 %v1919
        %1985 = vmatprep.subr.bf16.mxu0 %v1922
        %1986 = vmatpush1.bf16.msra.mxu0 %v1921
        %1987 = vmatprep.mubr.bf16.mxu0 %v1750
        %1988 = vmatmul.mubr.bf16.gmra.mrb[0].mxu0 %v1749
        %v1989 = vpop.f32.mrb[0].mxu0
        %v1990 = vadd.f32 %v1788, %v1989
        %v1991 = vpop.f32.mrb[0].mxu0
        %v1992 = vadd.f32 %v1792, %v1991
        %v1993 = vpop.f32.mrb[0].mxu0
        %v1994 = vadd.f32 %v1788, %v1993
        %v1995 = vpop.f32.mrb[0].mxu0
        %v1996 = vadd.f32 %v1792, %v1995
        %1997 = vdwg.mxu0
        %1998 = vst [vmem:[%s542] sm:$0xff] %v1990
        %1999 = vst [vmem:[%s542 + $0x8] sm:$0xff] %v1992
        %2000 = vst [vmem:[%s542 + $0x10] sm:$0xff] %v1994
        %2001 = vst [vmem:[%s542 + $0x18] sm:$0xff] %v1996
        %s2002 = sand.u32 %s287, 1
        %s2003 = scalar_lea.sflag [#allocation5], %s2002
        %s2004 = sand.u32 %s287, 1
        %s2005 = smul.addr %s2004, 32
        %s2006 = scalar_lea.vmem [#allocation15], %s2005
        // Predicated region
        $region93: #{tpu_custom_call.1} parent=63 // pred_check
          %p2007 = pneg %p297
        $region94: #{tpu_custom_call.1} parent=63 // pred_check_branch
          %2009 = sbr.rel (%p2007) target = $region96
        $region95: #{tpu_custom_call.1} parent=63 // pred_region
          %s2010 = smul.u32 2, %s33
          %s2012 = ssub.s32 512, 512
          %2013 = vsyncadd %s2003, %s2012
          %s2014 = smul.addr %s2010, 2
          %s2015 = smul.addr %s2014, 128
          %s2016 = scalar_lea.hbm %s11, %s2015
          %s2017 = sshll.u32 %s2006, 4
          %s2018 = int_to_ptr.vmem [resolvable:$true] %s2017
          %2023 = dma.vmem_to_hbm [thread:$0]  %s2018, 512, %s2016, %s2003, 256, 256, 16
        $region96: #{tpu_custom_call.1} parent=63 // pred_fallthru
          _
      $region64: #{tpu_custom_call.1} parent=5 // pred_fallthru
        _
      %p2024 = scmp.le.s32.totalorder 2, %s28
      // Predicated region
      $region97: #{tpu_custom_call.1} parent=5 // pred_check
        %p2025 = pneg %p2024
      $region98: #{tpu_custom_call.1} parent=5 // pred_check_branch
        %2027 = sbr.rel (%p2025) target = $region100
      $region99: #{tpu_custom_call.1} parent=5 // pred_region
        %s2028 = ssub.s32 %s28, 2
        // Predicated region
        $region101: #{tpu_custom_call.1} parent=99 // pred_check
          %p2029 = pneg %p303
        $region102: #{tpu_custom_call.1} parent=99 // pred_check_branch
          %2031 = sbr.rel (%p2029) target = $region104
        $region103: #{tpu_custom_call.1} parent=99 // pred_region
          %s2032 = sand.u32 %s288, 1
          %s2033 = scalar_lea.sflag [#allocation5], %s2032
          %s2034 = sand.u32 %s288, 1
          %s2035 = smul.addr %s2034, 32
          %s2036 = scalar_lea.vmem [#allocation15], %s2035
          %2037 = dma.done %s2033, 512
        $region104: #{tpu_custom_call.1} parent=99 // pred_fallthru
          _
      $region100: #{tpu_custom_call.1} parent=5 // pred_fallthru
        _
    $region6: #{tpu_custom_call.1} parent=1 // loop_footer
      %s32 = sadd.s32 1, %s28
    $region7: #{tpu_custom_call.1} parent=1 // loop_footer_branch
      %27 = sbr.rel target = $region3
    $region8: #{tpu_custom_call.1} parent=1 // loop_exit
      _
    %2038 = vsyncpa [#allocation4], 1
    %s2039 = scalar_lea.sflag [#allocation4], 1
    %2040 = vsyncpa %s2039, 1
    %2041 = vsyncpa [#allocation7], 1
    %s2042 = scalar_lea.sflag [#allocation7], 1
    %2043 = vsyncpa %s2042, 1
    %2044 = vsyncpa [#allocation10], 1
    %2045 = vsyncpa [#allocation13], 1
    %2046 = vsyncpa [#allocation5], 1
    %s2047 = scalar_lea.sflag [#allocation5], 1
    %2048 = vsyncpa %s2047, 1

</llo_original>
